<compile_context>
chip_gen: v7x
topology: tpu7x:2x2x1
jax: 0.10.0
libtpu: 0.0.40
codegen_flags: <defaults>
</compile_context>

<pallas_src>
import math
import functools

import jax
import jax.numpy as jnp
from jax.experimental import pallas as pl
from jax.experimental.pallas import tpu as pltpu


# ----------------------------------------------------------------------------
# Fused kernel: QKV projection + head-batched feature map + linear attention
# + output projection, one batch element per grid step.
# ----------------------------------------------------------------------------
def _fused_fast_attn_kernel(x_ref, wqkv_ref, bqkv_ref, orfbd_ref, normsel_ref,
                            wo_ref, bo_ref, o_ref, att_ref,
                            *, nhead, d_model, d_k, m, eps, mxu_dtype):
    cast = lambda t: t.astype(mxu_dtype)

    x = x_ref[0]                                                  # (L, d_model)

    # Fused Q/K/V projection (weights pre-transposed to (d_in, 3*d_model)).
    qkv = jnp.dot(cast(x), cast(wqkv_ref[...]),
                  preferred_element_type=jnp.float32) + bqkv_ref[...]

    qall = qkv[:, :d_model]                                       # (L, d_model)
    kall = qkv[:, d_model:2 * d_model]
    vall = qkv[:, 2 * d_model:]

    # Head-batched regular feature map.  orfbd is block-diagonal and already
    # contains the d_k**-0.25 projection scale; normsel computes the per-head
    # squared-norm / (2*sqrt(d_k)) broadcast across each head's m columns.
    # The 1/sqrt(m) feature scale is dropped: it cancels exactly in num/den.
    # TODO(synk): hyperbolic feature-map variant (use_hyperbolic=True) not
    # implemented; the module default is the regular feature map.
    def feature_map(t):
        proj = jnp.dot(cast(t), cast(orfbd_ref[...]),
                       preferred_element_type=jnp.float32)        # (L, H*m)
        nrm = jnp.dot(cast(t * t), cast(normsel_ref[...]),
                      preferred_element_type=jnp.float32)         # (L, H*m)
        return jnp.exp(proj - nrm) + eps

    qf = feature_map(qall)                                        # (L, H*m)
    kf = feature_map(kall)                                        # (L, H*m)

    # Per-head linear attention.  Heads live in contiguous d_k lane slices
    # (torch's view(B, L, nhead, d_k) layout), so results are stored directly
    # into the (L, d_model) scratch slab -- no concat, live ranges bounded.
    for h in range(nhead):
        qf_h = qf[:, h * m:(h + 1) * m]                           # (L, m)
        kf_h = kf[:, h * m:(h + 1) * m]                           # (L, m)
        v_h = vall[:, h * d_k:(h + 1) * d_k]                      # (L, d_k)

        buf = jax.lax.dot_general(                                # K^T V: (m, d_k)
            cast(kf_h), cast(v_h), (((0,), (0,)), ((), ())),
            preferred_element_type=jnp.float32)
        num = jnp.dot(cast(qf_h), cast(buf),
                      preferred_element_type=jnp.float32)         # (L, d_k)
        ksum = jnp.sum(kf_h, axis=0, keepdims=True)               # (1, m)
        den = jnp.sum(qf_h * ksum, axis=-1, keepdims=True)        # (L, 1)
        att_ref[:, h * d_k:(h + 1) * d_k] = num * pl.reciprocal(den, approx=False)

    # Fused output projection -> single lane-dense (L, d_model) store.
    out = jnp.dot(cast(att_ref[...]), cast(wo_ref[...]),
                  preferred_element_type=jnp.float32) + bo_ref[...]
    o_ref[0] = out.astype(o_ref.dtype)


def fast_self_attention_forward(x, packed, nhead, *, eps=1e-6,
                                mxu_dtype=jnp.float32):
    """x: (B, L, d_model) -> (B, L, d_model). `packed` from pack_params()."""
    B, L, d_model = x.shape
    d_k = d_model // nhead
    wqkv, bqkv, orf_bd, normsel, wo_t, bo = packed
    m = orf_bd.shape[1] // nhead

    kernel = functools.partial(
        _fused_fast_attn_kernel, nhead=nhead, d_model=d_model, d_k=d_k, m=m,
        eps=eps, mxu_dtype=mxu_dtype)

    # TODO(synk): for long L / large d_model, add an 'arbitrary' L-tile grid
    # axis with a two-pass scheme (accumulate K^T V and ksum over L tiles in
    # VMEM scratch, then apply qf tile by tile) so per-step VMEM stays bounded
    # on v7x (64 MiB physical); at these shapes everything fits comfortably.
    return pl.pallas_call(
        kernel,
        out_shape=jax.ShapeDtypeStruct((B, L, d_model), jnp.float32),
        grid=(B,),
        in_specs=[
            pl.BlockSpec((1, L, d_model), lambda b: (b, 0, 0)),
            pl.BlockSpec(wqkv.shape, lambda b: (0, 0)),     # resident weights
            pl.BlockSpec(bqkv.shape, lambda b: (0, 0)),
            pl.BlockSpec(orf_bd.shape, lambda b: (0, 0)),
            pl.BlockSpec(normsel.shape, lambda b: (0, 0)),
            pl.BlockSpec(wo_t.shape, lambda b: (0, 0)),
            pl.BlockSpec(bo.shape, lambda b: (0, 0)),
        ],
        out_specs=pl.BlockSpec((1, L, d_model), lambda b: (b, 0, 0)),
        scratch_shapes=[pltpu.VMEM((L, d_model), jnp.float32)],
        compiler_params=pltpu.CompilerParams(
            dimension_semantics=("parallel",),
            vmem_limit_bytes=64 * 1024 * 1024),
    )(x, wqkv, bqkv, orf_bd, normsel, wo_t, bo)


# ----------------------------------------------------------------------------
# Host-side parameter setup (one-time, plain JAX)
# ----------------------------------------------------------------------------
def create_orf(key, d_k, m):
    kb, ks = jax.random.split(key)
    nblocks = math.ceil(m / d_k)
    blocks = jax.random.normal(kb, (nblocks, d_k, d_k), dtype=jnp.float32)
    q, _ = jnp.linalg.qr(blocks)                                   # (nblocks, d_k, d_k)
    scale = jnp.linalg.norm(
        jax.random.normal(ks, (m, d_k), dtype=jnp.float32), axis=1)  # (m,)
    return scale[:, None] * q.reshape(-1, d_k)[:m]                 # (m, d_k)


def init_linear_params(key, d_model, n_layers=4):
    keys = jax.random.split(key, 2 * n_layers)
    bound = 1.0 / math.sqrt(d_model)
    params = []
    for i in range(n_layers):
        w = jax.random.uniform(keys[2 * i], (d_model, d_model),
                               jnp.float32, -bound, bound)         # (out, in) like torch
        b = jax.random.uniform(keys[2 * i + 1], (d_model,),
                               jnp.float32, -bound, bound)
        params.append((w, b))
    return params


def pack_params(params, orf, nhead):
    """Pre-fuse / pre-transpose everything the kernel needs."""
    (wq, bq), (wk, bk), (wv, bv), (wo, bo) = params
    m, d_k = orf.shape
    # Fused QKV weight, pre-transposed to (d_in, 3*d_model).
    wqkv = jnp.concatenate([wq.T, wk.T, wv.T], axis=1)
    bqkv = jnp.concatenate([bq, bk, bv]).reshape(1, -1)
    # Block-diagonal ORF with the d_k**-0.25 projection scale folded in.
    orf_t = orf.T * (float(d_k) ** -0.25)                          # (d_k, m)
    eye = jnp.eye(nhead, dtype=jnp.float32)
    orf_bd = jnp.kron(eye, orf_t)                                  # (d_model, nhead*m)
    # Head-norm selector: per-head sum of squares * 1/(2*sqrt(d_k)),
    # broadcast over that head's m columns.
    norm_scale = 1.0 / (2.0 * math.sqrt(d_k))
    normsel = jnp.kron(eye, jnp.full((d_k, m), norm_scale, jnp.float32))
    return wqkv, bqkv, orf_bd, normsel, wo.T, bo.reshape(1, -1)


# ----------------------------------------------------------------------------
# Pure-JAX reference (mirrors the PyTorch module) for the correctness check
# ----------------------------------------------------------------------------
def reference_forward(x, params, orf, nhead):
    B, L, d_model = x.shape
    d_k = d_model // nhead
    m = orf.shape[0]

    def linear(t, w, b):
        return t @ w.T + b

    def split_by_head(t):
        return (t.reshape(B, L, nhead, d_k)
                .transpose(0, 2, 1, 3)
                .reshape(B * nhead, L, d_k))

    def feature_map(t):
        proj = t @ orf.T / (d_k ** 0.25)
        norm = jnp.sum(t ** 2, axis=-1, keepdims=True) / (2.0 * math.sqrt(d_k))
        return (jnp.exp(proj - norm) + 1e-6) / math.sqrt(m)

    q = feature_map(split_by_head(linear(x, *params[0])))
    k = feature_map(split_by_head(linear(x, *params[1])))
    v = split_by_head(linear(x, *params[2]))

    ktv = jnp.einsum('bnm,bnd->bmd', k, v)
    ksum = jnp.sum(k, axis=1)
    num = jnp.einsum('bnm,bmd->bnd', q, ktv)
    den = jnp.einsum('bnm,bm->bn', q, ksum)
    out = num / den[..., None]
    out = (out.reshape(B, nhead, L, d_k)
           .transpose(0, 2, 1, 3)
           .reshape(B, L, d_model))
    return linear(out, *params[3])


if __name__ == "__main__":
    B, L, d_model, nhead, m = 2, 8, 32, 4, 16
    d_k = d_model // nhead

    key = jax.random.PRNGKey(0)
    k_x, k_orf, k_lin = jax.random.split(key, 3)

    x = jax.random.normal(k_x, (B, L, d_model), dtype=jnp.float32)
    orf = create_orf(k_orf, d_k, m)
    params = init_linear_params(k_lin, d_model)
    packed = pack_params(params, orf, nhead)

    out = fast_self_attention_forward(x, packed, nhead)
    out = jax.block_until_ready(out)

    ref = reference_forward(x, params, orf, nhead)
    assert out.shape == (B, L, d_model)
    assert jnp.allclose(out, ref, rtol=1e-4, atol=1e-4), "mismatch vs reference"

    print("KERNEL_OK")
</pallas_src>

<mosaic_0001>
module attributes {stable_mosaic.version = 11 : i64} {
  func.func @_fused_fast_attn_kernel(%arg0: i32, %arg1: memref<1x8x32xf32, #tpu.memory_space<vmem>>, %arg2: memref<32x96xf32, #tpu.memory_space<vmem>>, %arg3: memref<1x96xf32, #tpu.memory_space<vmem>>, %arg4: memref<32x64xf32, #tpu.memory_space<vmem>>, %arg5: memref<32x64xf32, #tpu.memory_space<vmem>>, %arg6: memref<32x32xf32, #tpu.memory_space<vmem>>, %arg7: memref<1x32xf32, #tpu.memory_space<vmem>>, %arg8: memref<1x8x32xf32, #tpu.memory_space<vmem>>, %arg9: memref<8x32xf32, #tpu.memory_space<vmem>>) attributes {dimension_semantics = [#tpu.dimension_semantics<parallel>], iteration_bounds = array<i64: 2>, scalar_prefetch = 0 : i64, scratch_operands = 1 : i64, tpu.core_type = #tpu.core_type<tc>, window_params = [{transform_indices = @transform_0, window_bounds = array<i64: 1, 8, 32>}, {pipeline_mode = #tpu.pipeline_mode<synchronous>, transform_indices = @transform_1, window_bounds = array<i64: 32, 96>}, {pipeline_mode = #tpu.pipeline_mode<synchronous>, transform_indices = @transform_2, window_bounds = array<i64: 1, 96>}, {pipeline_mode = #tpu.pipeline_mode<synchronous>, transform_indices = @transform_3, window_bounds = array<i64: 32, 64>}, {pipeline_mode = #tpu.pipeline_mode<synchronous>, transform_indices = @transform_4, window_bounds = array<i64: 32, 64>}, {pipeline_mode = #tpu.pipeline_mode<synchronous>, transform_indices = @transform_5, window_bounds = array<i64: 32, 32>}, {pipeline_mode = #tpu.pipeline_mode<synchronous>, transform_indices = @transform_6, window_bounds = array<i64: 1, 32>}, {transform_indices = @transform_7, window_bounds = array<i64: 1, 8, 32>}]} {
    %c0 = arith.constant 0 : index
    %c0_0 = arith.constant 0 : index
    %c0_1 = arith.constant 0 : index
    %0 = vector.load %arg1[%c0, %c0_0, %c0_1] : memref<1x8x32xf32, #tpu.memory_space<vmem>>, vector<1x8x32xf32>
    %1 = vector.shape_cast %0 : vector<1x8x32xf32> to vector<8x32xf32>
    %c0_2 = arith.constant 0 : index
    %c0_3 = arith.constant 0 : index
    %2 = vector.load %arg2[%c0_2, %c0_3] : memref<32x96xf32, #tpu.memory_space<vmem>>, vector<32x96xf32>
    %cst = arith.constant dense<0.000000e+00> : vector<8x96xf32>
    %3 = tpu.matmul %1, %2, %cst {dimension_numbers = #tpu.dot_dimension_numbers<[1], [0], [0], [1], [0, 0, 1, 1], [], []>} : vector<8x32xf32>, vector<32x96xf32>, vector<8x96xf32> -> vector<8x96xf32>
    %c0_4 = arith.constant 0 : index
    %c0_5 = arith.constant 0 : index
    %4 = vector.load %arg3[%c0_4, %c0_5] : memref<1x96xf32, #tpu.memory_space<vmem>>, vector<1x96xf32>
    %5 = vector.broadcast %4 : vector<1x96xf32> to vector<8x96xf32>
    %6 = arith.addf %3, %5 : vector<8x96xf32>
    %7 = vector.extract_strided_slice %6 {offsets = [0, 0], sizes = [8, 32], strides = [1, 1]} : vector<8x96xf32> to vector<8x32xf32>
    %8 = vector.extract_strided_slice %6 {offsets = [0, 32], sizes = [8, 32], strides = [1, 1]} : vector<8x96xf32> to vector<8x32xf32>
    %9 = vector.extract_strided_slice %6 {offsets = [0, 64], sizes = [8, 32], strides = [1, 1]} : vector<8x96xf32> to vector<8x32xf32>
    %c0_6 = arith.constant 0 : index
    %c0_7 = arith.constant 0 : index
    %10 = vector.load %arg4[%c0_6, %c0_7] : memref<32x64xf32, #tpu.memory_space<vmem>>, vector<32x64xf32>
    %cst_8 = arith.constant dense<0.000000e+00> : vector<8x64xf32>
    %11 = tpu.matmul %7, %10, %cst_8 {dimension_numbers = #tpu.dot_dimension_numbers<[1], [0], [0], [1], [0, 0, 1, 1], [], []>} : vector<8x32xf32>, vector<32x64xf32>, vector<8x64xf32> -> vector<8x64xf32>
    %12 = arith.mulf %7, %7 : vector<8x32xf32>
    %c0_9 = arith.constant 0 : index
    %c0_10 = arith.constant 0 : index
    %13 = vector.load %arg5[%c0_9, %c0_10] : memref<32x64xf32, #tpu.memory_space<vmem>>, vector<32x64xf32>
    %cst_11 = arith.constant dense<0.000000e+00> : vector<8x64xf32>
    %14 = tpu.matmul %12, %13, %cst_11 {dimension_numbers = #tpu.dot_dimension_numbers<[1], [0], [0], [1], [0, 0, 1, 1], [], []>} : vector<8x32xf32>, vector<32x64xf32>, vector<8x64xf32> -> vector<8x64xf32>
    %15 = arith.subf %11, %14 : vector<8x64xf32>
    %16 = math.exp %15 : vector<8x64xf32>
    %cst_12 = arith.constant 9.99999997E-7 : f32
    %17 = vector.broadcast %cst_12 : f32 to vector<8x64xf32>
    %18 = arith.addf %16, %17 : vector<8x64xf32>
    %c0_13 = arith.constant 0 : index
    %c0_14 = arith.constant 0 : index
    %19 = vector.load %arg4[%c0_13, %c0_14] : memref<32x64xf32, #tpu.memory_space<vmem>>, vector<32x64xf32>
    %cst_15 = arith.constant dense<0.000000e+00> : vector<8x64xf32>
    %20 = tpu.matmul %8, %19, %cst_15 {dimension_numbers = #tpu.dot_dimension_numbers<[1], [0], [0], [1], [0, 0, 1, 1], [], []>} : vector<8x32xf32>, vector<32x64xf32>, vector<8x64xf32> -> vector<8x64xf32>
    %21 = arith.mulf %8, %8 : vector<8x32xf32>
    %c0_16 = arith.constant 0 : index
    %c0_17 = arith.constant 0 : index
    %22 = vector.load %arg5[%c0_16, %c0_17] : memref<32x64xf32, #tpu.memory_space<vmem>>, vector<32x64xf32>
    %cst_18 = arith.constant dense<0.000000e+00> : vector<8x64xf32>
    %23 = tpu.matmul %21, %22, %cst_18 {dimension_numbers = #tpu.dot_dimension_numbers<[1], [0], [0], [1], [0, 0, 1, 1], [], []>} : vector<8x32xf32>, vector<32x64xf32>, vector<8x64xf32> -> vector<8x64xf32>
    %24 = arith.subf %20, %23 : vector<8x64xf32>
    %25 = math.exp %24 : vector<8x64xf32>
    %cst_19 = arith.constant 9.99999997E-7 : f32
    %26 = vector.broadcast %cst_19 : f32 to vector<8x64xf32>
    %27 = arith.addf %25, %26 : vector<8x64xf32>
    %28 = vector.extract_strided_slice %18 {offsets = [0, 0], sizes = [8, 16], strides = [1, 1]} : vector<8x64xf32> to vector<8x16xf32>
    %29 = vector.extract_strided_slice %27 {offsets = [0, 0], sizes = [8, 16], strides = [1, 1]} : vector<8x64xf32> to vector<8x16xf32>
    %30 = vector.extract_strided_slice %9 {offsets = [0, 0], sizes = [8, 8], strides = [1, 1]} : vector<8x32xf32> to vector<8x8xf32>
    %cst_20 = arith.constant dense<0.000000e+00> : vector<16x8xf32>
    %31 = tpu.matmul %29, %30, %cst_20 {dimension_numbers = #tpu.dot_dimension_numbers<[0], [0], [1], [1], [0, 1, 1, 1], [], []>} : vector<8x16xf32>, vector<8x8xf32>, vector<16x8xf32> -> vector<16x8xf32>
    %cst_21 = arith.constant dense<0.000000e+00> : vector<8x8xf32>
    %32 = tpu.matmul %28, %31, %cst_21 {dimension_numbers = #tpu.dot_dimension_numbers<[1], [0], [0], [1], [0, 0, 1, 1], [], []>} : vector<8x16xf32>, vector<16x8xf32>, vector<8x8xf32> -> vector<8x8xf32>
    %cst_22 = arith.constant dense<0.000000e+00> : vector<16xf32>
    %33 = vector.multi_reduction <add>, %29, %cst_22 [0] : vector<8x16xf32> to vector<16xf32>
    %34 = vector.shape_cast %33 : vector<16xf32> to vector<1x16xf32>
    %35 = vector.broadcast %34 : vector<1x16xf32> to vector<8x16xf32>
    %36 = arith.mulf %28, %35 : vector<8x16xf32>
    %cst_23 = arith.constant dense<0.000000e+00> : vector<8xf32>
    %37 = vector.multi_reduction <add>, %36, %cst_23 [1] : vector<8x16xf32> to vector<8xf32>
    %38 = vector.shape_cast %37 : vector<8xf32> to vector<8x1xf32>
    %39 = tpu.reciprocal %38 : vector<8x1xf32> -> vector<8x1xf32>
    %40 = vector.broadcast %39 : vector<8x1xf32> to vector<8x8xf32>
    %41 = arith.mulf %32, %40 : vector<8x8xf32>
    %c0_24 = arith.constant 0 : index
    %c0_25 = arith.constant 0 : index
    %42 = vector.load %arg9[%c0_24, %c0_25] : memref<8x32xf32, #tpu.memory_space<vmem>>, vector<8x8xf32>
    tpu.vector_store %arg9[%c0_24, %c0_25], %41 {strides = array<i32>} : memref<8x32xf32, #tpu.memory_space<vmem>>, vector<8x8xf32>,
    %43 = vector.extract_strided_slice %18 {offsets = [0, 16], sizes = [8, 16], strides = [1, 1]} : vector<8x64xf32> to vector<8x16xf32>
    %44 = vector.extract_strided_slice %27 {offsets = [0, 16], sizes = [8, 16], strides = [1, 1]} : vector<8x64xf32> to vector<8x16xf32>
    %45 = vector.extract_strided_slice %9 {offsets = [0, 8], sizes = [8, 8], strides = [1, 1]} : vector<8x32xf32> to vector<8x8xf32>
    %cst_26 = arith.constant dense<0.000000e+00> : vector<16x8xf32>
    %46 = tpu.matmul %44, %45, %cst_26 {dimension_numbers = #tpu.dot_dimension_numbers<[0], [0], [1], [1], [0, 1, 1, 1], [], []>} : vector<8x16xf32>, vector<8x8xf32>, vector<16x8xf32> -> vector<16x8xf32>
    %cst_27 = arith.constant dense<0.000000e+00> : vector<8x8xf32>
    %47 = tpu.matmul %43, %46, %cst_27 {dimension_numbers = #tpu.dot_dimension_numbers<[1], [0], [0], [1], [0, 0, 1, 1], [], []>} : vector<8x16xf32>, vector<16x8xf32>, vector<8x8xf32> -> vector<8x8xf32>
    %cst_28 = arith.constant dense<0.000000e+00> : vector<16xf32>
    %48 = vector.multi_reduction <add>, %44, %cst_28 [0] : vector<8x16xf32> to vector<16xf32>
    %49 = vector.shape_cast %48 : vector<16xf32> to vector<1x16xf32>
    %50 = vector.broadcast %49 : vector<1x16xf32> to vector<8x16xf32>
    %51 = arith.mulf %43, %50 : vector<8x16xf32>
    %cst_29 = arith.constant dense<0.000000e+00> : vector<8xf32>
    %52 = vector.multi_reduction <add>, %51, %cst_29 [1] : vector<8x16xf32> to vector<8xf32>
    %53 = vector.shape_cast %52 : vector<8xf32> to vector<8x1xf32>
    %54 = tpu.reciprocal %53 : vector<8x1xf32> -> vector<8x1xf32>
    %55 = vector.broadcast %54 : vector<8x1xf32> to vector<8x8xf32>
    %56 = arith.mulf %47, %55 : vector<8x8xf32>
    %c0_30 = arith.constant 0 : index
    %c8 = arith.constant 8 : index
    %57 = vector.load %arg9[%c0_30, %c8] : memref<8x32xf32, #tpu.memory_space<vmem>>, vector<8x8xf32>
    tpu.vector_store %arg9[%c0_30, %c8], %56 {strides = array<i32>} : memref<8x32xf32, #tpu.memory_space<vmem>>, vector<8x8xf32>,
    %58 = vector.extract_strided_slice %18 {offsets = [0, 32], sizes = [8, 16], strides = [1, 1]} : vector<8x64xf32> to vector<8x16xf32>
    %59 = vector.extract_strided_slice %27 {offsets = [0, 32], sizes = [8, 16], strides = [1, 1]} : vector<8x64xf32> to vector<8x16xf32>
    %60 = vector.extract_strided_slice %9 {offsets = [0, 16], sizes = [8, 8], strides = [1, 1]} : vector<8x32xf32> to vector<8x8xf32>
    %cst_31 = arith.constant dense<0.000000e+00> : vector<16x8xf32>
    %61 = tpu.matmul %59, %60, %cst_31 {dimension_numbers = #tpu.dot_dimension_numbers<[0], [0], [1], [1], [0, 1, 1, 1], [], []>} : vector<8x16xf32>, vector<8x8xf32>, vector<16x8xf32> -> vector<16x8xf32>
    %cst_32 = arith.constant dense<0.000000e+00> : vector<8x8xf32>
    %62 = tpu.matmul %58, %61, %cst_32 {dimension_numbers = #tpu.dot_dimension_numbers<[1], [0], [0], [1], [0, 0, 1, 1], [], []>} : vector<8x16xf32>, vector<16x8xf32>, vector<8x8xf32> -> vector<8x8xf32>
    %cst_33 = arith.constant dense<0.000000e+00> : vector<16xf32>
    %63 = vector.multi_reduction <add>, %59, %cst_33 [0] : vector<8x16xf32> to vector<16xf32>
    %64 = vector.shape_cast %63 : vector<16xf32> to vector<1x16xf32>
    %65 = vector.broadcast %64 : vector<1x16xf32> to vector<8x16xf32>
    %66 = arith.mulf %58, %65 : vector<8x16xf32>
    %cst_34 = arith.constant dense<0.000000e+00> : vector<8xf32>
    %67 = vector.multi_reduction <add>, %66, %cst_34 [1] : vector<8x16xf32> to vector<8xf32>
    %68 = vector.shape_cast %67 : vector<8xf32> to vector<8x1xf32>
    %69 = tpu.reciprocal %68 : vector<8x1xf32> -> vector<8x1xf32>
    %70 = vector.broadcast %69 : vector<8x1xf32> to vector<8x8xf32>
    %71 = arith.mulf %62, %70 : vector<8x8xf32>
    %c0_35 = arith.constant 0 : index
    %c16 = arith.constant 16 : index
    %72 = vector.load %arg9[%c0_35, %c16] : memref<8x32xf32, #tpu.memory_space<vmem>>, vector<8x8xf32>
    tpu.vector_store %arg9[%c0_35, %c16], %71 {strides = array<i32>} : memref<8x32xf32, #tpu.memory_space<vmem>>, vector<8x8xf32>,
    %73 = vector.extract_strided_slice %18 {offsets = [0, 48], sizes = [8, 16], strides = [1, 1]} : vector<8x64xf32> to vector<8x16xf32>
    %74 = vector.extract_strided_slice %27 {offsets = [0, 48], sizes = [8, 16], strides = [1, 1]} : vector<8x64xf32> to vector<8x16xf32>
    %75 = vector.extract_strided_slice %9 {offsets = [0, 24], sizes = [8, 8], strides = [1, 1]} : vector<8x32xf32> to vector<8x8xf32>
    %cst_36 = arith.constant dense<0.000000e+00> : vector<16x8xf32>
    %76 = tpu.matmul %74, %75, %cst_36 {dimension_numbers = #tpu.dot_dimension_numbers<[0], [0], [1], [1], [0, 1, 1, 1], [], []>} : vector<8x16xf32>, vector<8x8xf32>, vector<16x8xf32> -> vector<16x8xf32>
    %cst_37 = arith.constant dense<0.000000e+00> : vector<8x8xf32>
    %77 = tpu.matmul %73, %76, %cst_37 {dimension_numbers = #tpu.dot_dimension_numbers<[1], [0], [0], [1], [0, 0, 1, 1], [], []>} : vector<8x16xf32>, vector<16x8xf32>, vector<8x8xf32> -> vector<8x8xf32>
    %cst_38 = arith.constant dense<0.000000e+00> : vector<16xf32>
    %78 = vector.multi_reduction <add>, %74, %cst_38 [0] : vector<8x16xf32> to vector<16xf32>
    %79 = vector.shape_cast %78 : vector<16xf32> to vector<1x16xf32>
    %80 = vector.broadcast %79 : vector<1x16xf32> to vector<8x16xf32>
    %81 = arith.mulf %73, %80 : vector<8x16xf32>
    %cst_39 = arith.constant dense<0.000000e+00> : vector<8xf32>
    %82 = vector.multi_reduction <add>, %81, %cst_39 [1] : vector<8x16xf32> to vector<8xf32>
    %83 = vector.shape_cast %82 : vector<8xf32> to vector<8x1xf32>
    %84 = tpu.reciprocal %83 : vector<8x1xf32> -> vector<8x1xf32>
    %85 = vector.broadcast %84 : vector<8x1xf32> to vector<8x8xf32>
    %86 = arith.mulf %77, %85 : vector<8x8xf32>
    %c0_40 = arith.constant 0 : index
    %c24 = arith.constant 24 : index
    %87 = vector.load %arg9[%c0_40, %c24] : memref<8x32xf32, #tpu.memory_space<vmem>>, vector<8x8xf32>
    tpu.vector_store %arg9[%c0_40, %c24], %86 {strides = array<i32>} : memref<8x32xf32, #tpu.memory_space<vmem>>, vector<8x8xf32>,
    %c0_41 = arith.constant 0 : index
    %c0_42 = arith.constant 0 : index
    %88 = vector.load %arg9[%c0_41, %c0_42] : memref<8x32xf32, #tpu.memory_space<vmem>>, vector<8x32xf32>
    %c0_43 = arith.constant 0 : index
    %c0_44 = arith.constant 0 : index
    %89 = vector.load %arg6[%c0_43, %c0_44] : memref<32x32xf32, #tpu.memory_space<vmem>>, vector<32x32xf32>
    %cst_45 = arith.constant dense<0.000000e+00> : vector<8x32xf32>
    %90 = tpu.matmul %88, %89, %cst_45 {dimension_numbers = #tpu.dot_dimension_numbers<[1], [0], [0], [1], [0, 0, 1, 1], [], []>} : vector<8x32xf32>, vector<32x32xf32>, vector<8x32xf32> -> vector<8x32xf32>
    %c0_46 = arith.constant 0 : index
    %c0_47 = arith.constant 0 : index
    %91 = vector.load %arg7[%c0_46, %c0_47] : memref<1x32xf32, #tpu.memory_space<vmem>>, vector<1x32xf32>
    %92 = vector.broadcast %91 : vector<1x32xf32> to vector<8x32xf32>
    %93 = arith.addf %90, %92 : vector<8x32xf32>
    %c0_48 = arith.constant 0 : index
    %c0_49 = arith.constant 0 : index
    %c0_50 = arith.constant 0 : index
    %94 = vector.load %arg8[%c0_48, %c0_49, %c0_50] : memref<1x8x32xf32, #tpu.memory_space<vmem>>, vector<1x8x32xf32>
    %95 = vector.shape_cast %94 : vector<1x8x32xf32> to vector<8x32xf32>
    %96 = vector.shape_cast %93 : vector<8x32xf32> to vector<1x8x32xf32>
    tpu.vector_store %arg8[%c0_48, %c0_49, %c0_50], %96 {strides = array<i32>} : memref<1x8x32xf32, #tpu.memory_space<vmem>>, vector<1x8x32xf32>,
    return
  }
  func.func @transform_0(%arg0: i32) -> (i32, i32, i32) {
    %c0_i32 = arith.constant 0 : i32
    %c0_i32_0 = arith.constant 0 : i32
    %c0_i32_1 = arith.constant 0 : i32
    return %arg0, %c0_i32, %c0_i32_0 : i32, i32, i32
  }
  func.func @transform_1(%arg0: i32) -> (i32, i32) {
    %c0_i32 = arith.constant 0 : i32
    %c0_i32_0 = arith.constant 0 : i32
    %c0_i32_1 = arith.constant 0 : i32
    return %c0_i32, %c0_i32_0 : i32, i32
  }
  func.func @transform_2(%arg0: i32) -> (i32, i32) {
    %c0_i32 = arith.constant 0 : i32
    %c0_i32_0 = arith.constant 0 : i32
    %c0_i32_1 = arith.constant 0 : i32
    return %c0_i32, %c0_i32_0 : i32, i32
  }
  func.func @transform_3(%arg0: i32) -> (i32, i32) {
    %c0_i32 = arith.constant 0 : i32
    %c0_i32_0 = arith.constant 0 : i32
    %c0_i32_1 = arith.constant 0 : i32
    return %c0_i32, %c0_i32_0 : i32, i32
  }
  func.func @transform_4(%arg0: i32) -> (i32, i32) {
    %c0_i32 = arith.constant 0 : i32
    %c0_i32_0 = arith.constant 0 : i32
    %c0_i32_1 = arith.constant 0 : i32
    return %c0_i32, %c0_i32_0 : i32, i32
  }
  func.func @transform_5(%arg0: i32) -> (i32, i32) {
    %c0_i32 = arith.constant 0 : i32
    %c0_i32_0 = arith.constant 0 : i32
    %c0_i32_1 = arith.constant 0 : i32
    return %c0_i32, %c0_i32_0 : i32, i32
  }
  func.func @transform_6(%arg0: i32) -> (i32, i32) {
    %c0_i32 = arith.constant 0 : i32
    %c0_i32_0 = arith.constant 0 : i32
    %c0_i32_1 = arith.constant 0 : i32
    return %c0_i32, %c0_i32_0 : i32, i32
  }
  func.func @transform_7(%arg0: i32) -> (i32, i32, i32) {
    %c0_i32 = arith.constant 0 : i32
    %c0_i32_0 = arith.constant 0 : i32
    %c0_i32_1 = arith.constant 0 : i32
    return %arg0, %c0_i32, %c0_i32_0 : i32, i32, i32
  }
}

</mosaic_0001>

<llo_original>
// kernel: tpu_custom_call.1
$region0: #{tpu_custom_call.1}
  #allocation0 [shape = 'u32[]', space=smem, size = 0x4, offset = 0x4, fixed_abs, tag = 'smem constant byte address 0x4 - core index']
  #allocation1 [shape = 'u32[144,128]{1,0:T(1,128)}', space=vmem, size = 0x12000, scoped, tag = 'internal scratch']
  #allocation2 [shape = 'f32[8,32]{1,0:T(8,128)}', space=vmem, size = 0x1000, scoped, tag = 'scratch operand']
  %s0 = inlined_call_operand.hbm [shape: f32[2,8,32], index: 0, kind: input, shape index: {}]
  %s1 = inlined_call_operand.hbm [shape: f32[32,96], index: 1, kind: input, shape index: {}]
  %s2 = inlined_call_operand.hbm [shape: f32[1,96], index: 2, kind: input, shape index: {}]
  %s3 = inlined_call_operand.hbm [shape: f32[32,64], index: 3, kind: input, shape index: {}]
  %s4 = inlined_call_operand.hbm [shape: f32[32,64], index: 4, kind: input, shape index: {}]
  %s5 = inlined_call_operand.hbm [shape: f32[32,32], index: 5, kind: input, shape index: {}]
  %s6 = inlined_call_operand.hbm [shape: f32[1,32], index: 6, kind: input, shape index: {}]
  %s7 = inlined_call_operand.hbm [shape: f32[2,8,32], index: 7, kind: output, shape index: {}]
  %s8 = sld [smem:[#allocation0]]
  $region89: #{tpu_custom_call.1} parent=0
    _
  %s10 = ssub.s32 1, %s8
  %s11 = scalar_select 0, %s10, %s8
  $region1: #{tpu_custom_call.1} parent=0
    #allocation3 [shape = 'u8[8192]{0}', space=vmem, size = 0x2000, scoped, tag = 'input window, operand 0']
    #allocation4 [shape = 's32[2]{0}', space=sflag, size = 0x8, scoped, tag = 'scoped memory for tpu_custom_call.1']
    #allocation5 [shape = 's32[2]{0}', space=sflag, size = 0x8, scoped, tag = 'scoped memory for tpu_custom_call.1']
    #allocation6 [shape = 'u8[16384]{0}', space=vmem, size = 0x4000, scoped, tag = 'input window, operand 1, single buffered']
    #allocation7 [shape = 's32[1]{0}', space=sflag, size = 0x4, scoped, tag = 'scoped memory for tpu_custom_call.1']
    #allocation8 [shape = 'u8[512]{0}', space=vmem, size = 0x400, scoped, tag = 'input window, operand 2, single buffered']
    #allocation9 [shape = 'u8[16384]{0}', space=vmem, size = 0x4000, scoped, tag = 'input window, operand 3, single buffered']
    #allocation10 [shape = 's32[1]{0}', space=sflag, size = 0x4, scoped, tag = 'scoped memory for tpu_custom_call.1']
    #allocation11 [shape = 'u8[16384]{0}', space=vmem, size = 0x4000, scoped, tag = 'input window, operand 4, single buffered']
    #allocation12 [shape = 'u8[16384]{0}', space=vmem, size = 0x4000, scoped, tag = 'input window, operand 5, single buffered']
    #allocation13 [shape = 's32[1]{0}', space=sflag, size = 0x4, scoped, tag = 'scoped memory for tpu_custom_call.1']
    #allocation14 [shape = 'u8[512]{0}', space=vmem, size = 0x400, scoped, tag = 'input window, operand 6, single buffered']
    #allocation15 [shape = 'u8[8192]{0}', space=vmem, size = 0x2000, scoped, tag = 'output window, operand 0']
    %12 = vsyncpa [#allocation4], 0
    %s13 = scalar_lea.sflag [#allocation4], 1
    %14 = vsyncpa %s13, 0
    %15 = vsyncpa [#allocation7], 0
    %16 = vsyncpa [#allocation10], 0
    %17 = vsyncpa [#allocation13], 0
    %18 = vsyncpa [#allocation5], 0
    %s19 = scalar_lea.sflag [#allocation5], 1
    %20 = vsyncpa %s19, 0
    loop: start=0, step=1, limit=4
    $region2: #{tpu_custom_call.1} parent=1 // loop_pre_header
      _
    $region3: #{tpu_custom_call.1} parent=1 // loop_header
      %s22 = sphi 0, %s26
      %p23 = scmp.ge.s32.totalorder %s22, 4
      %s32 = sphi 0, %s34
      %s35 = sphi 0, %s32
      %s36 = sphi 0, %s35
      %s52 = sphi 0, %s36
      %s56 = sphi 0, %s56
      %s58 = sphi 0, %s56
      %s59 = sphi 0, %s58
      %s73 = sphi 0, %s59
      %s77 = sphi 0, %s77
      %s79 = sphi 0, %s77
      %s80 = sphi 0, %s79
      %s94 = sphi 0, %s80
      %s98 = sphi 0, %s98
      %s100 = sphi 0, %s98
      %s101 = sphi 0, %s100
      %s115 = sphi 0, %s101
      %s119 = sphi 0, %s119
      %s121 = sphi 0, %s119
      %s122 = sphi 0, %s121
      %s136 = sphi 0, %s122
      %s140 = sphi 0, %s140
      %s142 = sphi 0, %s140
      %s143 = sphi 0, %s142
      %s157 = sphi 0, %s143
      %s161 = sphi 0, %s161
      %s163 = sphi 0, %s161
      %s164 = sphi 0, %s163
      %s178 = sphi 0, %s164
      %s184 = sphi 0, %s186
      %s187 = sphi 0, %s184
      %s188 = sphi 0, %s187
      %s204 = sphi 0, %s188
    $region4: #{tpu_custom_call.1} parent=1 // loop_header_branch
      %25 = sbr.rel (%p23) target = $region8
    $region5: #{tpu_custom_call.1} parent=1 // loop_body
      %s27 = ssub.s32 %s22, 1
      %s28 = ssub.s32 %s22, 2
      %s29 = sadd.s32 %s22, 1
      %s30 = ssub.s32 %s22, %s29
      %p31 = scmp.eq.s32.totalorder %s30, 0
      %s33 = sadd.s32 %s32, 1
      %s34 = scalar_select %p31, %s32, %s33
      %p37 = pneg %p31
      %p38 = scmp.eq.s32.totalorder %s22, 1
      %p39 = por %p37, %p38
      %p40 = scmp.ne.s32.totalorder %s32, %s35
      %p41 = scmp.eq.s32.totalorder %s22, 0
      %p42 = por %p40, %p41
      %p43 = scmp.ne.s32.totalorder %s32, %s35
      %p44 = scmp.eq.s32.totalorder %s27, 1
      %p45 = por %p43, %p44
      %p46 = scmp.ne.s32.totalorder %s35, %s36
      %p47 = scmp.eq.s32.totalorder %s27, 0
      %p48 = por %p46, %p47
      %p49 = scmp.ne.s32.totalorder %s35, %s36
      %p50 = scmp.eq.s32.totalorder %s28, 1
      %p51 = por %p49, %p50
      %p53 = scmp.ne.s32.totalorder %s36, %s52
      %p54 = scmp.eq.s32.totalorder %s28, 0
      %p55 = por %p53, %p54
      %s57 = sadd.s32 %s56, 1
      %p60 = scmp.eq.s32.totalorder %s22, 1
      %p61 = scmp.ne.s32.totalorder %s56, %s58
      %p62 = scmp.eq.s32.totalorder %s22, 0
      %p63 = por %p61, %p62
      %p64 = scmp.ne.s32.totalorder %s56, %s58
      %p65 = scmp.eq.s32.totalorder %s27, 1
      %p66 = por %p64, %p65
      %p67 = scmp.ne.s32.totalorder %s58, %s59
      %p68 = scmp.eq.s32.totalorder %s27, 0
      %p69 = por %p67, %p68
      %p70 = scmp.ne.s32.totalorder %s58, %s59
      %p71 = scmp.eq.s32.totalorder %s28, 1
      %p72 = por %p70, %p71
      %p74 = scmp.ne.s32.totalorder %s59, %s73
      %p75 = scmp.eq.s32.totalorder %s28, 0
      %p76 = por %p74, %p75
      %s78 = sadd.s32 %s77, 1
      %p81 = scmp.eq.s32.totalorder %s22, 1
      %p82 = scmp.ne.s32.totalorder %s77, %s79
      %p83 = scmp.eq.s32.totalorder %s22, 0
      %p84 = por %p82, %p83
      %p85 = scmp.ne.s32.totalorder %s77, %s79
      %p86 = scmp.eq.s32.totalorder %s27, 1
      %p87 = por %p85, %p86
      %p88 = scmp.ne.s32.totalorder %s79, %s80
      %p89 = scmp.eq.s32.totalorder %s27, 0
      %p90 = por %p88, %p89
      %p91 = scmp.ne.s32.totalorder %s79, %s80
      %p92 = scmp.eq.s32.totalorder %s28, 1
      %p93 = por %p91, %p92
      %p95 = scmp.ne.s32.totalorder %s80, %s94
      %p96 = scmp.eq.s32.totalorder %s28, 0
      %p97 = por %p95, %p96
      %s99 = sadd.s32 %s98, 1
      %p102 = scmp.eq.s32.totalorder %s22, 1
      %p103 = scmp.ne.s32.totalorder %s98, %s100
      %p104 = scmp.eq.s32.totalorder %s22, 0
      %p105 = por %p103, %p104
      %p106 = scmp.ne.s32.totalorder %s98, %s100
      %p107 = scmp.eq.s32.totalorder %s27, 1
      %p108 = por %p106, %p107
      %p109 = scmp.ne.s32.totalorder %s100, %s101
      %p110 = scmp.eq.s32.totalorder %s27, 0
      %p111 = por %p109, %p110
      %p112 = scmp.ne.s32.totalorder %s100, %s101
      %p113 = scmp.eq.s32.totalorder %s28, 1
      %p114 = por %p112, %p113
      %p116 = scmp.ne.s32.totalorder %s101, %s115
      %p117 = scmp.eq.s32.totalorder %s28, 0
      %p118 = por %p116, %p117
      %s120 = sadd.s32 %s119, 1
      %p123 = scmp.eq.s32.totalorder %s22, 1
      %p124 = scmp.ne.s32.totalorder %s119, %s121
      %p125 = scmp.eq.s32.totalorder %s22, 0
      %p126 = por %p124, %p125
      %p127 = scmp.ne.s32.totalorder %s119, %s121
      %p128 = scmp.eq.s32.totalorder %s27, 1
      %p129 = por %p127, %p128
      %p130 = scmp.ne.s32.totalorder %s121, %s122
      %p131 = scmp.eq.s32.totalorder %s27, 0
      %p132 = por %p130, %p131
      %p133 = scmp.ne.s32.totalorder %s121, %s122
      %p134 = scmp.eq.s32.totalorder %s28, 1
      %p135 = por %p133, %p134
      %p137 = scmp.ne.s32.totalorder %s122, %s136
      %p138 = scmp.eq.s32.totalorder %s28, 0
      %p139 = por %p137, %p138
      %s141 = sadd.s32 %s140, 1
      %p144 = scmp.eq.s32.totalorder %s22, 1
      %p145 = scmp.ne.s32.totalorder %s140, %s142
      %p146 = scmp.eq.s32.totalorder %s22, 0
      %p147 = por %p145, %p146
      %p148 = scmp.ne.s32.totalorder %s140, %s142
      %p149 = scmp.eq.s32.totalorder %s27, 1
      %p150 = por %p148, %p149
      %p151 = scmp.ne.s32.totalorder %s142, %s143
      %p152 = scmp.eq.s32.totalorder %s27, 0
      %p153 = por %p151, %p152
      %p154 = scmp.ne.s32.totalorder %s142, %s143
      %p155 = scmp.eq.s32.totalorder %s28, 1
      %p156 = por %p154, %p155
      %p158 = scmp.ne.s32.totalorder %s143, %s157
      %p159 = scmp.eq.s32.totalorder %s28, 0
      %p160 = por %p158, %p159
      %s162 = sadd.s32 %s161, 1
      %p165 = scmp.eq.s32.totalorder %s22, 1
      %p166 = scmp.ne.s32.totalorder %s161, %s163
      %p167 = scmp.eq.s32.totalorder %s22, 0
      %p168 = por %p166, %p167
      %p169 = scmp.ne.s32.totalorder %s161, %s163
      %p170 = scmp.eq.s32.totalorder %s27, 1
      %p171 = por %p169, %p170
      %p172 = scmp.ne.s32.totalorder %s163, %s164
      %p173 = scmp.eq.s32.totalorder %s27, 0
      %p174 = por %p172, %p173
      %p175 = scmp.ne.s32.totalorder %s163, %s164
      %p176 = scmp.eq.s32.totalorder %s28, 1
      %p177 = por %p175, %p176
      %p179 = scmp.ne.s32.totalorder %s164, %s178
      %p180 = scmp.eq.s32.totalorder %s28, 0
      %p181 = por %p179, %p180
      %s182 = ssub.s32 %s22, %s29
      %p183 = scmp.eq.s32.totalorder %s182, 0
      %s185 = sadd.s32 %s184, 1
      %s186 = scalar_select %p183, %s184, %s185
      %p189 = pneg %p183
      %p190 = scmp.eq.s32.totalorder %s22, 1
      %p191 = por %p189, %p190
      %p192 = scmp.ne.s32.totalorder %s184, %s187
      %p193 = scmp.eq.s32.totalorder %s22, 0
      %p194 = por %p192, %p193
      %p195 = scmp.ne.s32.totalorder %s184, %s187
      %p196 = scmp.eq.s32.totalorder %s27, 1
      %p197 = por %p195, %p196
      %p198 = scmp.ne.s32.totalorder %s187, %s188
      %p199 = scmp.eq.s32.totalorder %s27, 0
      %p200 = por %p198, %p199
      %p201 = scmp.ne.s32.totalorder %s187, %s188
      %p202 = scmp.eq.s32.totalorder %s28, 1
      %p203 = por %p201, %p202
      %p205 = scmp.ne.s32.totalorder %s188, %s204
      %p206 = scmp.eq.s32.totalorder %s28, 0
      %p207 = por %p205, %p206
      %p208 = scmp.le.s32.totalorder 1, %s22
      %p209 = scmp.lt.s32.totalorder %s22, 3
      %p210 = pnand %p208, %p209
      %p211 = pneg %p210
      // Predicated region
      $region9: #{tpu_custom_call.1} parent=5 // pred_check
        _
      $region10: #{tpu_custom_call.1} parent=5 // pred_check_branch
        %213 = sbr.rel (%p210) target = $region12
      $region11: #{tpu_custom_call.1} parent=5 // pred_region
        %s214 = ssub.s32 %s22, 1
        // Predicated region
        $region13: #{tpu_custom_call.1} parent=11 // pred_check
          %p215 = pneg %p69
        $region14: #{tpu_custom_call.1} parent=11 // pred_check_branch
          %217 = sbr.rel (%p215) target = $region16
        $region15: #{tpu_custom_call.1} parent=11 // pred_region
          %s219 = ssub.s32 512, 512
          %220 = vsyncadd [#allocation7], %s219
          %s221 = sshll.u32 [#allocation6], 4
          %s222 = int_to_ptr.vmem [resolvable:$true] %s221
          %227 = dma.hbm_to_vmem [thread:$0]  %s1, 512, %s222, [#allocation7], 128, 128, 8
        $region16: #{tpu_custom_call.1} parent=11 // pred_fallthru
          _
        // Predicated region
        $region17: #{tpu_custom_call.1} parent=11 // pred_check
          %p228 = pneg %p90
        $region18: #{tpu_custom_call.1} parent=11 // pred_check_branch
          %230 = sbr.rel (%p228) target = $region20
        $region19: #{tpu_custom_call.1} parent=11 // pred_region
          %s232 = ssub.s32 16, 16
          %233 = vsyncadd [#allocation7], %s232
          %s235 = sshll.u32 [#allocation8], 4
          %s236 = int_to_ptr.vmem [resolvable:$true] %s235
          %238 = dma.hbm_to_vmem [thread:$0]  %s2, 16, %s236, [#allocation7]
        $region20: #{tpu_custom_call.1} parent=11 // pred_fallthru
          _
        // Predicated region
        $region21: #{tpu_custom_call.1} parent=11 // pred_check
          %p239 = pneg %p111
        $region22: #{tpu_custom_call.1} parent=11 // pred_check_branch
          %241 = sbr.rel (%p239) target = $region24
        $region23: #{tpu_custom_call.1} parent=11 // pred_region
          %s243 = ssub.s32 512, 512
          %244 = vsyncadd [#allocation10], %s243
          %s245 = sshll.u32 [#allocation9], 4
          %s246 = int_to_ptr.vmem [resolvable:$true] %s245
          %251 = dma.hbm_to_vmem [thread:$0]  %s3, 512, %s246, [#allocation10], 128, 128, 8
        $region24: #{tpu_custom_call.1} parent=11 // pred_fallthru
          _
        // Predicated region
        $region25: #{tpu_custom_call.1} parent=11 // pred_check
          %p252 = pneg %p132
        $region26: #{tpu_custom_call.1} parent=11 // pred_check_branch
          %254 = sbr.rel (%p252) target = $region28
        $region27: #{tpu_custom_call.1} parent=11 // pred_region
          %s256 = ssub.s32 512, 512
          %257 = vsyncadd [#allocation10], %s256
          %s258 = sshll.u32 [#allocation11], 4
          %s259 = int_to_ptr.vmem [resolvable:$true] %s258
          %264 = dma.hbm_to_vmem [thread:$0]  %s4, 512, %s259, [#allocation10], 128, 128, 8
        $region28: #{tpu_custom_call.1} parent=11 // pred_fallthru
          _
        // Predicated region
        $region29: #{tpu_custom_call.1} parent=11 // pred_check
          %p265 = pneg %p153
        $region30: #{tpu_custom_call.1} parent=11 // pred_check_branch
          %267 = sbr.rel (%p265) target = $region32
        $region31: #{tpu_custom_call.1} parent=11 // pred_region
          %s269 = ssub.s32 512, 512
          %270 = vsyncadd [#allocation13], %s269
          %s271 = sshll.u32 [#allocation12], 4
          %s272 = int_to_ptr.vmem [resolvable:$true] %s271
          %277 = dma.hbm_to_vmem [thread:$0]  %s5, 512, %s272, [#allocation13], 128, 128, 8
        $region32: #{tpu_custom_call.1} parent=11 // pred_fallthru
          _
        // Predicated region
        $region33: #{tpu_custom_call.1} parent=11 // pred_check
          %p278 = pneg %p174
        $region34: #{tpu_custom_call.1} parent=11 // pred_check_branch
          %280 = sbr.rel (%p278) target = $region36
        $region35: #{tpu_custom_call.1} parent=11 // pred_region
          %s282 = ssub.s32 16, 16
          %283 = vsyncadd [#allocation13], %s282
          %s285 = sshll.u32 [#allocation14], 4
          %s286 = int_to_ptr.vmem [resolvable:$true] %s285
          %288 = dma.hbm_to_vmem [thread:$0]  %s6, 16, %s286, [#allocation13]
        $region36: #{tpu_custom_call.1} parent=11 // pred_fallthru
          _
      $region12: #{tpu_custom_call.1} parent=5 // pred_fallthru
        _
      %p289 = scmp.lt.s32.totalorder %s22, 2
      // Predicated region
      $region37: #{tpu_custom_call.1} parent=5 // pred_check
        %p290 = pneg %p289
      $region38: #{tpu_custom_call.1} parent=5 // pred_check_branch
        %292 = sbr.rel (%p290) target = $region40
      $region39: #{tpu_custom_call.1} parent=5 // pred_region
        // Predicated region
        $region41: #{tpu_custom_call.1} parent=39 // pred_check
          %p293 = pneg %p42
        $region42: #{tpu_custom_call.1} parent=39 // pred_check_branch
          %295 = sbr.rel (%p293) target = $region44
        $region43: #{tpu_custom_call.1} parent=39 // pred_region
          %s296 = sand.u32 %s32, 1
          %s297 = scalar_lea.sflag [#allocation4], %s296
          %s298 = sand.u32 %s32, 1
          %s299 = smul.addr %s298, 8
          %s300 = scalar_lea.vmem [#allocation3], %s299
          %s302 = ssub.s32 128, 128
          %303 = vsyncadd %s297, %s302
          %s304 = smul.addr %s22, 128
          %s305 = scalar_lea.hbm %s0, %s304
          %s307 = sshll.u32 %s300, 4
          %s308 = int_to_ptr.vmem [resolvable:$true] %s307
          %310 = dma.hbm_to_vmem [thread:$0]  %s305, 128, %s308, %s297
        $region44: #{tpu_custom_call.1} parent=39 // pred_fallthru
          _
      $region40: #{tpu_custom_call.1} parent=5 // pred_fallthru
        _
      %p311 = scmp.le.s32.totalorder 1, %s22
      %p312 = scmp.lt.s32.totalorder %s22, 3
      %p313 = pnand %p311, %p312
      %p314 = pneg %p313
      // Predicated region
      $region45: #{tpu_custom_call.1} parent=5 // pred_check
        _
      $region46: #{tpu_custom_call.1} parent=5 // pred_check_branch
        %316 = sbr.rel (%p313) target = $region48
      $region47: #{tpu_custom_call.1} parent=5 // pred_region
        %s317 = ssub.s32 %s22, 1
        %s318 = sand.u32 %s35, 1
        %s319 = scalar_lea.sflag [#allocation4], %s318
        %s320 = sand.u32 %s35, 1
        %s321 = smul.addr %s320, 8
        %s322 = scalar_lea.vmem [#allocation3], %s321
        // Predicated region
        $region49: #{tpu_custom_call.1} parent=47 // pred_check
          %p323 = pneg %p48
        $region50: #{tpu_custom_call.1} parent=47 // pred_check_branch
          %325 = sbr.rel (%p323) target = $region52
        $region51: #{tpu_custom_call.1} parent=47 // pred_region
          %326 = dma.done %s319, 128
        $region52: #{tpu_custom_call.1} parent=47 // pred_fallthru
          _
        // Predicated region
        $region53: #{tpu_custom_call.1} parent=47 // pred_check
          %p327 = pneg %p69
        $region54: #{tpu_custom_call.1} parent=47 // pred_check_branch
          %329 = sbr.rel (%p327) target = $region56
        $region55: #{tpu_custom_call.1} parent=47 // pred_region
          %330 = dma.done [#allocation7], 512
        $region56: #{tpu_custom_call.1} parent=47 // pred_fallthru
          _
        // Predicated region
        $region57: #{tpu_custom_call.1} parent=47 // pred_check
          %p331 = pneg %p90
        $region58: #{tpu_custom_call.1} parent=47 // pred_check_branch
          %333 = sbr.rel (%p331) target = $region60
        $region59: #{tpu_custom_call.1} parent=47 // pred_region
          %334 = dma.done [#allocation7], 16
        $region60: #{tpu_custom_call.1} parent=47 // pred_fallthru
          _
        // Predicated region
        $region61: #{tpu_custom_call.1} parent=47 // pred_check
          %p335 = pneg %p111
        $region62: #{tpu_custom_call.1} parent=47 // pred_check_branch
          %337 = sbr.rel (%p335) target = $region64
        $region63: #{tpu_custom_call.1} parent=47 // pred_region
          %338 = dma.done [#allocation10], 512
        $region64: #{tpu_custom_call.1} parent=47 // pred_fallthru
          _
        // Predicated region
        $region65: #{tpu_custom_call.1} parent=47 // pred_check
          %p339 = pneg %p132
        $region66: #{tpu_custom_call.1} parent=47 // pred_check_branch
          %341 = sbr.rel (%p339) target = $region68
        $region67: #{tpu_custom_call.1} parent=47 // pred_region
          %342 = dma.done [#allocation10], 512
        $region68: #{tpu_custom_call.1} parent=47 // pred_fallthru
          _
        // Predicated region
        $region69: #{tpu_custom_call.1} parent=47 // pred_check
          %p343 = pneg %p153
        $region70: #{tpu_custom_call.1} parent=47 // pred_check_branch
          %345 = sbr.rel (%p343) target = $region72
        $region71: #{tpu_custom_call.1} parent=47 // pred_region
          %346 = dma.done [#allocation13], 512
        $region72: #{tpu_custom_call.1} parent=47 // pred_fallthru
          _
        // Predicated region
        $region73: #{tpu_custom_call.1} parent=47 // pred_check
          %p347 = pneg %p174
        $region74: #{tpu_custom_call.1} parent=47 // pred_check_branch
          %349 = sbr.rel (%p347) target = $region76
        $region75: #{tpu_custom_call.1} parent=47 // pred_region
          %350 = dma.done [#allocation13], 16
        $region76: #{tpu_custom_call.1} parent=47 // pred_fallthru
          _
        %s351 = sand.u32 %s35, 1
        %s352 = scalar_lea.sflag [#allocation4], %s351
        %s353 = sand.u32 %s35, 1
        %s354 = smul.addr %s353, 8
        %s355 = scalar_lea.vmem [#allocation3], %s354
        %p356 = pneg %p48
        %p357 = pneg %p45
        %p358 = pneg %p69
        %p359 = pneg %p66
        %p360 = pneg %p90
        %p361 = pneg %p87
        %p362 = pneg %p111
        %p363 = pneg %p108
        %p364 = pneg %p132
        %p365 = pneg %p129
        %p366 = pneg %p153
        %p367 = pneg %p150
        %p368 = pneg %p174
        %p369 = pneg %p171
        %p370 = pneg %p200
        %p371 = pneg %p197
        %s372 = sand.u32 %s187, 1
        %s373 = scalar_lea.sflag [#allocation5], %s372
        %s374 = sand.u32 %s187, 1
        %s375 = smul.addr %s374, 8
        %s376 = scalar_lea.vmem [#allocation15], %s375
        %v377 = vld [vmem:[%s322] sm:$0xff]
        %v378 = vld [vmem:[#allocation6] sm:$0xff]
        %v379 = vld [vmem:[#allocation6 + $0x8] sm:$0xff]
        %v380 = vld [vmem:[#allocation6 + $0x10] sm:$0xff]
        %v381 = vld [vmem:[#allocation6 + $0x18] sm:$0xff]
        %v382 = vld [vmem:[#allocation8] sm:$0x1]
        %v384 = vlaneseq
        %v385 = vshrl.u32 %v384, 7
        %v386 = vsub.s32 0, %v385
        %v387 = vrot.slane %v382, %v386
        %vm389 = vcmask 261120
        %v391 = vsel %vm389, %v377, 0
        %393 = vmatprep.subr.mxu0 0.0
        %394 = vmatpush1.msra.mxu0 %v378
        %395 = vmatprep.subr.mxu0 0.0
        %396 = vmatpush1.msra.mxu0 %v379
        %397 = vmatprep.subr.mxu0 0.0
        %398 = vmatpush1.msra.mxu0 %v380
        %399 = vmatprep.subr.mxu0 0.0
        %400 = vmatpush1.msra.mxu0 %v381
        %401 = vmatprep.subr.mxu0 0.0
        %402 = vmatpush1.msra.mxu0 0.0
        %403 = vmatprep.subr.mxu0 0.0
        %404 = vmatpush1.msra.mxu0 0.0
        %405 = vmatprep.subr.mxu0 0.0
        %406 = vmatpush1.msra.mxu0 0.0
        %407 = vmatprep.subr.mxu0 0.0
        %408 = vmatpush1.msra.mxu0 0.0
        %409 = vmatprep.subr.mxu0 0.0
        %410 = vmatpush1.msra.mxu0 0.0
        %411 = vmatprep.subr.mxu0 0.0
        %412 = vmatpush1.msra.mxu0 0.0
        %413 = vmatprep.subr.mxu0 0.0
        %414 = vmatpush1.msra.mxu0 0.0
        %415 = vmatprep.subr.mxu0 0.0
        %416 = vmatpush1.msra.mxu0 0.0
        %417 = vmatprep.subr.mxu0 0.0
        %418 = vmatpush1.msra.mxu0 0.0
        %419 = vmatprep.subr.mxu0 0.0
        %420 = vmatpush1.msra.mxu0 0.0
        %421 = vmatprep.subr.mxu0 0.0
        %422 = vmatpush1.msra.mxu0 0.0
        %423 = vmatprep.subr.mxu0 0.0
        %424 = vmatpush1.msra.mxu0 0.0
        %425 = vmatprep.subr.mxu0 0.0
        %426 = vmatpush1.msra.mxu0 0.0
        %427 = vmatprep.subr.mxu0 0.0
        %428 = vmatpush1.msra.mxu0 0.0
        %429 = vmatprep.subr.mxu0 0.0
        %430 = vmatpush1.msra.mxu0 0.0
        %431 = vmatprep.subr.mxu0 0.0
        %432 = vmatpush1.msra.mxu0 0.0
        %433 = vmatprep.subr.mxu0 0.0
        %434 = vmatpush1.msra.mxu0 0.0
        %435 = vmatprep.subr.mxu0 0.0
        %436 = vmatpush1.msra.mxu0 0.0
        %437 = vmatprep.subr.mxu0 0.0
        %438 = vmatpush1.msra.mxu0 0.0
        %439 = vmatprep.subr.mxu0 0.0
        %440 = vmatpush1.msra.mxu0 0.0
        %441 = vmatprep.subr.mxu0 0.0
        %442 = vmatpush1.msra.mxu0 0.0
        %443 = vmatprep.subr.mxu0 0.0
        %444 = vmatpush1.msra.mxu0 0.0
        %445 = vmatprep.subr.mxu0 0.0
        %446 = vmatpush1.msra.mxu0 0.0
        %447 = vmatprep.subr.mxu0 0.0
        %448 = vmatpush1.msra.mxu0 0.0
        %449 = vmatprep.subr.mxu0 0.0
        %450 = vmatpush1.msra.mxu0 0.0
        %451 = vmatprep.subr.mxu0 0.0
        %452 = vmatpush1.msra.mxu0 0.0
        %453 = vmatprep.subr.mxu0 0.0
        %454 = vmatpush1.msra.mxu0 0.0
        %455 = vmatprep.subr.mxu0 0.0
        %456 = vmatpush1.msra.mxu0 0.0
        %457 = vmatprep.mubr.f32.mxu0 0.0
        %458 = vmatmul.mubr.f32.gmra.mrb[0].mxu0 %v391
        %v459 = vpop.f32.mrb[0].mxu0
        %v460 = vadd.f32 %v387, %v459
        %v461 = vpop.f32.mrb[0].mxu0
        %462 = vdwg.mxu0
        %v463 = vld [vmem:[#allocation9] sm:$0xff]
        %v464 = vld [vmem:[#allocation9 + $0x8] sm:$0xff]
        %v465 = vld [vmem:[#allocation9 + $0x10] sm:$0xff]
        %v466 = vld [vmem:[#allocation9 + $0x18] sm:$0xff]
        %v468 = vsel %vm389, %v460, 0
        %470 = vmatprep.subr.mxu0 0.0
        %471 = vmatpush1.msra.mxu0 %v463
        %472 = vmatprep.subr.mxu0 0.0
        %473 = vmatpush1.msra.mxu0 %v464
        %474 = vmatprep.subr.mxu0 0.0
        %475 = vmatpush1.msra.mxu0 %v465
        %476 = vmatprep.subr.mxu0 0.0
        %477 = vmatpush1.msra.mxu0 %v466
        %478 = vmatprep.subr.mxu0 0.0
        %479 = vmatpush1.msra.mxu0 0.0
        %480 = vmatprep.subr.mxu0 0.0
        %481 = vmatpush1.msra.mxu0 0.0
        %482 = vmatprep.subr.mxu0 0.0
        %483 = vmatpush1.msra.mxu0 0.0
        %484 = vmatprep.subr.mxu0 0.0
        %485 = vmatpush1.msra.mxu0 0.0
        %486 = vmatprep.subr.mxu0 0.0
        %487 = vmatpush1.msra.mxu0 0.0
        %488 = vmatprep.subr.mxu0 0.0
        %489 = vmatpush1.msra.mxu0 0.0
        %490 = vmatprep.subr.mxu0 0.0
        %491 = vmatpush1.msra.mxu0 0.0
        %492 = vmatprep.subr.mxu0 0.0
        %493 = vmatpush1.msra.mxu0 0.0
        %494 = vmatprep.subr.mxu0 0.0
        %495 = vmatpush1.msra.mxu0 0.0
        %496 = vmatprep.subr.mxu0 0.0
        %497 = vmatpush1.msra.mxu0 0.0
        %498 = vmatprep.subr.mxu0 0.0
        %499 = vmatpush1.msra.mxu0 0.0
        %500 = vmatprep.subr.mxu0 0.0
        %501 = vmatpush1.msra.mxu0 0.0
        %502 = vmatprep.subr.mxu0 0.0
        %503 = vmatpush1.msra.mxu0 0.0
        %504 = vmatprep.subr.mxu0 0.0
        %505 = vmatpush1.msra.mxu0 0.0
        %506 = vmatprep.subr.mxu0 0.0
        %507 = vmatpush1.msra.mxu0 0.0
        %508 = vmatprep.subr.mxu0 0.0
        %509 = vmatpush1.msra.mxu0 0.0
        %510 = vmatprep.subr.mxu0 0.0
        %511 = vmatpush1.msra.mxu0 0.0
        %512 = vmatprep.subr.mxu0 0.0
        %513 = vmatpush1.msra.mxu0 0.0
        %514 = vmatprep.subr.mxu0 0.0
        %515 = vmatpush1.msra.mxu0 0.0
        %516 = vmatprep.subr.mxu0 0.0
        %517 = vmatpush1.msra.mxu0 0.0
        %518 = vmatprep.subr.mxu0 0.0
        %519 = vmatpush1.msra.mxu0 0.0
        %520 = vmatprep.subr.mxu0 0.0
        %521 = vmatpush1.msra.mxu0 0.0
        %522 = vmatprep.subr.mxu0 0.0
        %523 = vmatpush1.msra.mxu0 0.0
        %524 = vmatprep.subr.mxu0 0.0
        %525 = vmatpush1.msra.mxu0 0.0
        %526 = vmatprep.subr.mxu0 0.0
        %527 = vmatpush1.msra.mxu0 0.0
        %528 = vmatprep.subr.mxu0 0.0
        %529 = vmatpush1.msra.mxu0 0.0
        %530 = vmatprep.subr.mxu0 0.0
        %531 = vmatpush1.msra.mxu0 0.0
        %532 = vmatprep.subr.mxu0 0.0
        %533 = vmatpush1.msra.mxu0 0.0
        %534 = vmatprep.mubr.f32.mxu0 0.0
        %535 = vmatmul.mubr.f32.gmra.mrb[0].mxu0 %v468
        %v536 = vpop.f32.mrb[0].mxu0
        %v537 = vadd.f32 0.0, %v536
        %v538 = vpop.f32.mrb[0].mxu0
        %539 = vdwg.mxu0
        %v540 = vmul.f32 %v460, %v460
        %v541 = vld [vmem:[#allocation11] sm:$0xff]
        %v542 = vld [vmem:[#allocation11 + $0x8] sm:$0xff]
        %v543 = vld [vmem:[#allocation11 + $0x10] sm:$0xff]
        %v544 = vld [vmem:[#allocation11 + $0x18] sm:$0xff]
        %v546 = vsel %vm389, %v540, 0
        %548 = vmatprep.subr.mxu0 0.0
        %549 = vmatpush1.msra.mxu0 %v541
        %550 = vmatprep.subr.mxu0 0.0
        %551 = vmatpush1.msra.mxu0 %v542
        %552 = vmatprep.subr.mxu0 0.0
        %553 = vmatpush1.msra.mxu0 %v543
        %554 = vmatprep.subr.mxu0 0.0
        %555 = vmatpush1.msra.mxu0 %v544
        %556 = vmatprep.subr.mxu0 0.0
        %557 = vmatpush1.msra.mxu0 0.0
        %558 = vmatprep.subr.mxu0 0.0
        %559 = vmatpush1.msra.mxu0 0.0
        %560 = vmatprep.subr.mxu0 0.0
        %561 = vmatpush1.msra.mxu0 0.0
        %562 = vmatprep.subr.mxu0 0.0
        %563 = vmatpush1.msra.mxu0 0.0
        %564 = vmatprep.subr.mxu0 0.0
        %565 = vmatpush1.msra.mxu0 0.0
        %566 = vmatprep.subr.mxu0 0.0
        %567 = vmatpush1.msra.mxu0 0.0
        %568 = vmatprep.subr.mxu0 0.0
        %569 = vmatpush1.msra.mxu0 0.0
        %570 = vmatprep.subr.mxu0 0.0
        %571 = vmatpush1.msra.mxu0 0.0
        %572 = vmatprep.subr.mxu0 0.0
        %573 = vmatpush1.msra.mxu0 0.0
        %574 = vmatprep.subr.mxu0 0.0
        %575 = vmatpush1.msra.mxu0 0.0
        %576 = vmatprep.subr.mxu0 0.0
        %577 = vmatpush1.msra.mxu0 0.0
        %578 = vmatprep.subr.mxu0 0.0
        %579 = vmatpush1.msra.mxu0 0.0
        %580 = vmatprep.subr.mxu0 0.0
        %581 = vmatpush1.msra.mxu0 0.0
        %582 = vmatprep.subr.mxu0 0.0
        %583 = vmatpush1.msra.mxu0 0.0
        %584 = vmatprep.subr.mxu0 0.0
        %585 = vmatpush1.msra.mxu0 0.0
        %586 = vmatprep.subr.mxu0 0.0
        %587 = vmatpush1.msra.mxu0 0.0
        %588 = vmatprep.subr.mxu0 0.0
        %589 = vmatpush1.msra.mxu0 0.0
        %590 = vmatprep.subr.mxu0 0.0
        %591 = vmatpush1.msra.mxu0 0.0
        %592 = vmatprep.subr.mxu0 0.0
        %593 = vmatpush1.msra.mxu0 0.0
        %594 = vmatprep.subr.mxu0 0.0
        %595 = vmatpush1.msra.mxu0 0.0
        %596 = vmatprep.subr.mxu0 0.0
        %597 = vmatpush1.msra.mxu0 0.0
        %598 = vmatprep.subr.mxu0 0.0
        %599 = vmatpush1.msra.mxu0 0.0
        %600 = vmatprep.subr.mxu0 0.0
        %601 = vmatpush1.msra.mxu0 0.0
        %602 = vmatprep.subr.mxu0 0.0
        %603 = vmatpush1.msra.mxu0 0.0
        %604 = vmatprep.subr.mxu0 0.0
        %605 = vmatpush1.msra.mxu0 0.0
        %606 = vmatprep.subr.mxu0 0.0
        %607 = vmatpush1.msra.mxu0 0.0
        %608 = vmatprep.subr.mxu0 0.0
        %609 = vmatpush1.msra.mxu0 0.0
        %610 = vmatprep.subr.mxu0 0.0
        %611 = vmatpush1.msra.mxu0 0.0
        %612 = vmatprep.mubr.f32.mxu0 0.0
        %613 = vmatmul.mubr.f32.gmra.mrb[0].mxu0 %v546
        %v614 = vpop.f32.mrb[0].mxu0
        %v615 = vadd.f32 0.0, %v614
        %v616 = vpop.f32.mrb[0].mxu0
        %617 = vdwg.mxu0
        %v618 = vsub.f32 %v537, %v615
        %v619 = vmul.f32 %v618, 1.442695
        %v620 = vpow.pop %v619
        %v621 = vadd.f32 %v620, 1e-06
        %622 = vrot.lane.b32.xlu0 %v460, 96
        %v623 = vpop.permute.xlu0 %622
        %v624 = vsel %vm389, %v623, 0
        %626 = vmatprep.subr.mxu0 0.0
        %627 = vmatpush1.msra.mxu0 %v463
        %628 = vmatprep.subr.mxu0 0.0
        %629 = vmatpush1.msra.mxu0 %v464
        %630 = vmatprep.subr.mxu0 0.0
        %631 = vmatpush1.msra.mxu0 %v465
        %632 = vmatprep.subr.mxu0 0.0
        %633 = vmatpush1.msra.mxu0 %v466
        %634 = vmatprep.subr.mxu0 0.0
        %635 = vmatpush1.msra.mxu0 0.0
        %636 = vmatprep.subr.mxu0 0.0
        %637 = vmatpush1.msra.mxu0 0.0
        %638 = vmatprep.subr.mxu0 0.0
        %639 = vmatpush1.msra.mxu0 0.0
        %640 = vmatprep.subr.mxu0 0.0
        %641 = vmatpush1.msra.mxu0 0.0
        %642 = vmatprep.subr.mxu0 0.0
        %643 = vmatpush1.msra.mxu0 0.0
        %644 = vmatprep.subr.mxu0 0.0
        %645 = vmatpush1.msra.mxu0 0.0
        %646 = vmatprep.subr.mxu0 0.0
        %647 = vmatpush1.msra.mxu0 0.0
        %648 = vmatprep.subr.mxu0 0.0
        %649 = vmatpush1.msra.mxu0 0.0
        %650 = vmatprep.subr.mxu0 0.0
        %651 = vmatpush1.msra.mxu0 0.0
        %652 = vmatprep.subr.mxu0 0.0
        %653 = vmatpush1.msra.mxu0 0.0
        %654 = vmatprep.subr.mxu0 0.0
        %655 = vmatpush1.msra.mxu0 0.0
        %656 = vmatprep.subr.mxu0 0.0
        %657 = vmatpush1.msra.mxu0 0.0
        %658 = vmatprep.subr.mxu0 0.0
        %659 = vmatpush1.msra.mxu0 0.0
        %660 = vmatprep.subr.mxu0 0.0
        %661 = vmatpush1.msra.mxu0 0.0
        %662 = vmatprep.subr.mxu0 0.0
        %663 = vmatpush1.msra.mxu0 0.0
        %664 = vmatprep.subr.mxu0 0.0
        %665 = vmatpush1.msra.mxu0 0.0
        %666 = vmatprep.subr.mxu0 0.0
        %667 = vmatpush1.msra.mxu0 0.0
        %668 = vmatprep.subr.mxu0 0.0
        %669 = vmatpush1.msra.mxu0 0.0
        %670 = vmatprep.subr.mxu0 0.0
        %671 = vmatpush1.msra.mxu0 0.0
        %672 = vmatprep.subr.mxu0 0.0
        %673 = vmatpush1.msra.mxu0 0.0
        %674 = vmatprep.subr.mxu0 0.0
        %675 = vmatpush1.msra.mxu0 0.0
        %676 = vmatprep.subr.mxu0 0.0
        %677 = vmatpush1.msra.mxu0 0.0
        %678 = vmatprep.subr.mxu0 0.0
        %679 = vmatpush1.msra.mxu0 0.0
        %680 = vmatprep.subr.mxu0 0.0
        %681 = vmatpush1.msra.mxu0 0.0
        %682 = vmatprep.subr.mxu0 0.0
        %683 = vmatpush1.msra.mxu0 0.0
        %684 = vmatprep.subr.mxu0 0.0
        %685 = vmatpush1.msra.mxu0 0.0
        %686 = vmatprep.subr.mxu0 0.0
        %687 = vmatpush1.msra.mxu0 0.0
        %688 = vmatprep.subr.mxu0 0.0
        %689 = vmatpush1.msra.mxu0 0.0
        %690 = vmatprep.mubr.f32.mxu0 0.0
        %691 = vmatmul.mubr.f32.gmra.mrb[0].mxu0 %v624
        %v692 = vpop.f32.mrb[0].mxu0
        %v693 = vadd.f32 0.0, %v692
        %v694 = vpop.f32.mrb[0].mxu0
        %695 = vdwg.mxu0
        %696 = vrot.lane.b32.xlu0 %v540, 96
        %v697 = vpop.permute.xlu0 %696
        %v698 = vsel %vm389, %v697, 0
        %700 = vmatprep.subr.mxu0 0.0
        %701 = vmatpush1.msra.mxu0 %v541
        %702 = vmatprep.subr.mxu0 0.0
        %703 = vmatpush1.msra.mxu0 %v542
        %704 = vmatprep.subr.mxu0 0.0
        %705 = vmatpush1.msra.mxu0 %v543
        %706 = vmatprep.subr.mxu0 0.0
        %707 = vmatpush1.msra.mxu0 %v544
        %708 = vmatprep.subr.mxu0 0.0
        %709 = vmatpush1.msra.mxu0 0.0
        %710 = vmatprep.subr.mxu0 0.0
        %711 = vmatpush1.msra.mxu0 0.0
        %712 = vmatprep.subr.mxu0 0.0
        %713 = vmatpush1.msra.mxu0 0.0
        %714 = vmatprep.subr.mxu0 0.0
        %715 = vmatpush1.msra.mxu0 0.0
        %716 = vmatprep.subr.mxu0 0.0
        %717 = vmatpush1.msra.mxu0 0.0
        %718 = vmatprep.subr.mxu0 0.0
        %719 = vmatpush1.msra.mxu0 0.0
        %720 = vmatprep.subr.mxu0 0.0
        %721 = vmatpush1.msra.mxu0 0.0
        %722 = vmatprep.subr.mxu0 0.0
        %723 = vmatpush1.msra.mxu0 0.0
        %724 = vmatprep.subr.mxu0 0.0
        %725 = vmatpush1.msra.mxu0 0.0
        %726 = vmatprep.subr.mxu0 0.0
        %727 = vmatpush1.msra.mxu0 0.0
        %728 = vmatprep.subr.mxu0 0.0
        %729 = vmatpush1.msra.mxu0 0.0
        %730 = vmatprep.subr.mxu0 0.0
        %731 = vmatpush1.msra.mxu0 0.0
        %732 = vmatprep.subr.mxu0 0.0
        %733 = vmatpush1.msra.mxu0 0.0
        %734 = vmatprep.subr.mxu0 0.0
        %735 = vmatpush1.msra.mxu0 0.0
        %736 = vmatprep.subr.mxu0 0.0
        %737 = vmatpush1.msra.mxu0 0.0
        %738 = vmatprep.subr.mxu0 0.0
        %739 = vmatpush1.msra.mxu0 0.0
        %740 = vmatprep.subr.mxu0 0.0
        %741 = vmatpush1.msra.mxu0 0.0
        %742 = vmatprep.subr.mxu0 0.0
        %743 = vmatpush1.msra.mxu0 0.0
        %744 = vmatprep.subr.mxu0 0.0
        %745 = vmatpush1.msra.mxu0 0.0
        %746 = vmatprep.subr.mxu0 0.0
        %747 = vmatpush1.msra.mxu0 0.0
        %748 = vmatprep.subr.mxu0 0.0
        %749 = vmatpush1.msra.mxu0 0.0
        %750 = vmatprep.subr.mxu0 0.0
        %751 = vmatpush1.msra.mxu0 0.0
        %752 = vmatprep.subr.mxu0 0.0
        %753 = vmatpush1.msra.mxu0 0.0
        %754 = vmatprep.subr.mxu0 0.0
        %755 = vmatpush1.msra.mxu0 0.0
        %756 = vmatprep.subr.mxu0 0.0
        %757 = vmatpush1.msra.mxu0 0.0
        %758 = vmatprep.subr.mxu0 0.0
        %759 = vmatpush1.msra.mxu0 0.0
        %760 = vmatprep.subr.mxu0 0.0
        %761 = vmatpush1.msra.mxu0 0.0
        %762 = vmatprep.subr.mxu0 0.0
        %763 = vmatpush1.msra.mxu0 0.0
        %764 = vmatprep.mubr.f32.mxu0 0.0
        %765 = vmatmul.mubr.f32.gmra.mrb[0].mxu0 %v698
        %v766 = vpop.f32.mrb[0].mxu0
        %v767 = vadd.f32 0.0, %v766
        %v768 = vpop.f32.mrb[0].mxu0
        %769 = vdwg.mxu0
        %v770 = vsub.f32 %v693, %v767
        %v771 = vmul.f32 %v770, 1.442695
        %v772 = vpow.pop %v771
        %v773 = vadd.f32 %v772, 1e-06
        %774 = vxpose.xlu0.b32.start [1/16] %v773, 128
        %775 = vxpose.xlu0.b32.cont [2/16] 0.0, 128
        %776 = vxpose.xlu0.b32.cont [3/16] 0.0, 128
        %777 = vxpose.xlu0.b32.cont [4/16] 0.0, 128
        %778 = vxpose.xlu0.b32.cont [5/16] 0.0, 128
        %779 = vxpose.xlu0.b32.cont [6/16] 0.0, 128
        %780 = vxpose.xlu0.b32.cont [7/16] 0.0, 128
        %781 = vxpose.xlu0.b32.cont [8/16] 0.0, 128
        %782 = vxpose.xlu0.b32.cont [9/16] 0.0, 128
        %783 = vxpose.xlu0.b32.cont [10/16] 0.0, 128
        %784 = vxpose.xlu0.b32.cont [11/16] 0.0, 128
        %785 = vxpose.xlu0.b32.cont [12/16] 0.0, 128
        %786 = vxpose.xlu0.b32.cont [13/16] 0.0, 128
        %787 = vxpose.xlu0.b32.cont [14/16] 0.0, 128
        %788 = vxpose.xlu0.b32.cont [15/16] 0.0, 128
        %789 = vxpose.xlu0.b32.end [16/16] 0.0, 128
        %v790 = vpop.trf.xlu0
        %v791 = vpop.trf.xlu0
        %v792 = vpop.trf.xlu0
        %v793 = vpop.trf.xlu0
        %v794 = vpop.trf.xlu0
        %v795 = vpop.trf.xlu0
        %v796 = vpop.trf.xlu0
        %v797 = vpop.trf.xlu0
        %v798 = vpop.trf.xlu0
        %v799 = vpop.trf.xlu0
        %v800 = vpop.trf.xlu0
        %v801 = vpop.trf.xlu0
        %v802 = vpop.trf.xlu0
        %v803 = vpop.trf.xlu0
        %v804 = vpop.trf.xlu0
        %v805 = vpop.trf.xlu0
        %806 = vrot.lane.b32.xlu0 %v460, 64
        %v807 = vpop.permute.xlu0 %806
        %vm809 = vcmask 64512
        %v811 = vsel %vm809, %v790, 0
        %v814 = vsel %vm809, %v791, 0
        %816 = vmatprep.subr.mxu0 0.0
        %817 = vmatpush1.msra.mxu0 %v807
        %818 = vmatprep.subr.mxu0 0.0
        %819 = vmatpush1.msra.mxu0 0.0
        %820 = vmatprep.subr.mxu0 0.0
        %821 = vmatpush1.msra.mxu0 0.0
        %822 = vmatprep.subr.mxu0 0.0
        %823 = vmatpush1.msra.mxu0 0.0
        %824 = vmatprep.subr.mxu0 0.0
        %825 = vmatpush1.msra.mxu0 0.0
        %826 = vmatprep.subr.mxu0 0.0
        %827 = vmatpush1.msra.mxu0 0.0
        %828 = vmatprep.subr.mxu0 0.0
        %829 = vmatpush1.msra.mxu0 0.0
        %830 = vmatprep.subr.mxu0 0.0
        %831 = vmatpush1.msra.mxu0 0.0
        %832 = vmatprep.subr.mxu0 0.0
        %833 = vmatpush1.msra.mxu0 0.0
        %834 = vmatprep.subr.mxu0 0.0
        %835 = vmatpush1.msra.mxu0 0.0
        %836 = vmatprep.subr.mxu0 0.0
        %837 = vmatpush1.msra.mxu0 0.0
        %838 = vmatprep.subr.mxu0 0.0
        %839 = vmatpush1.msra.mxu0 0.0
        %840 = vmatprep.subr.mxu0 0.0
        %841 = vmatpush1.msra.mxu0 0.0
        %842 = vmatprep.subr.mxu0 0.0
        %843 = vmatpush1.msra.mxu0 0.0
        %844 = vmatprep.subr.mxu0 0.0
        %845 = vmatpush1.msra.mxu0 0.0
        %846 = vmatprep.subr.mxu0 0.0
        %847 = vmatpush1.msra.mxu0 0.0
        %848 = vmatprep.subr.mxu0 0.0
        %849 = vmatpush1.msra.mxu0 0.0
        %850 = vmatprep.subr.mxu0 0.0
        %851 = vmatpush1.msra.mxu0 0.0
        %852 = vmatprep.subr.mxu0 0.0
        %853 = vmatpush1.msra.mxu0 0.0
        %854 = vmatprep.subr.mxu0 0.0
        %855 = vmatpush1.msra.mxu0 0.0
        %856 = vmatprep.subr.mxu0 0.0
        %857 = vmatpush1.msra.mxu0 0.0
        %858 = vmatprep.subr.mxu0 0.0
        %859 = vmatpush1.msra.mxu0 0.0
        %860 = vmatprep.subr.mxu0 0.0
        %861 = vmatpush1.msra.mxu0 0.0
        %862 = vmatprep.subr.mxu0 0.0
        %863 = vmatpush1.msra.mxu0 0.0
        %864 = vmatprep.subr.mxu0 0.0
        %865 = vmatpush1.msra.mxu0 0.0
        %866 = vmatprep.subr.mxu0 0.0
        %867 = vmatpush1.msra.mxu0 0.0
        %868 = vmatprep.subr.mxu0 0.0
        %869 = vmatpush1.msra.mxu0 0.0
        %870 = vmatprep.subr.mxu0 0.0
        %871 = vmatpush1.msra.mxu0 0.0
        %872 = vmatprep.subr.mxu0 0.0
        %873 = vmatpush1.msra.mxu0 0.0
        %874 = vmatprep.subr.mxu0 0.0
        %875 = vmatpush1.msra.mxu0 0.0
        %876 = vmatprep.subr.mxu0 0.0
        %877 = vmatpush1.msra.mxu0 0.0
        %878 = vmatprep.subr.mxu0 0.0
        %879 = vmatpush1.msra.mxu0 0.0
        %880 = vmatprep.mubr.f32.mxu0 0.0
        %881 = vmatmul.mubr.f32.gmra.mrb[0].mxu0 %v811
        %v882 = vpop.f32.mrb[0].mxu0
        %v883 = vadd.f32 0.0, %v882
        %v884 = vpop.f32.mrb[0].mxu0
        %885 = vmatprep.mubr.f32.mxu0 0.0
        %886 = vmatmul.mubr.f32.gmra.mrb[0].mxu0 %v814
        %v887 = vpop.f32.mrb[0].mxu0
        %v888 = vadd.f32 0.0, %v887
        %v889 = vpop.f32.mrb[0].mxu0
        %890 = vdwg.mxu0
        %vm891 = vcmask 130048
        %v893 = vsel %vm891, %v621, 0
        %895 = vmatprep.subr.mxu0 0.0
        %896 = vmatpush1.msra.mxu0 %v883
        %897 = vmatprep.subr.mxu0 0.0
        %898 = vmatpush1.msra.mxu0 %v888
        %899 = vmatprep.subr.mxu0 0.0
        %900 = vmatpush1.msra.mxu0 0.0
        %901 = vmatprep.subr.mxu0 0.0
        %902 = vmatpush1.msra.mxu0 0.0
        %903 = vmatprep.subr.mxu0 0.0
        %904 = vmatpush1.msra.mxu0 0.0
        %905 = vmatprep.subr.mxu0 0.0
        %906 = vmatpush1.msra.mxu0 0.0
        %907 = vmatprep.subr.mxu0 0.0
        %908 = vmatpush1.msra.mxu0 0.0
        %909 = vmatprep.subr.mxu0 0.0
        %910 = vmatpush1.msra.mxu0 0.0
        %911 = vmatprep.subr.mxu0 0.0
        %912 = vmatpush1.msra.mxu0 0.0
        %913 = vmatprep.subr.mxu0 0.0
        %914 = vmatpush1.msra.mxu0 0.0
        %915 = vmatprep.subr.mxu0 0.0
        %916 = vmatpush1.msra.mxu0 0.0
        %917 = vmatprep.subr.mxu0 0.0
        %918 = vmatpush1.msra.mxu0 0.0
        %919 = vmatprep.subr.mxu0 0.0
        %920 = vmatpush1.msra.mxu0 0.0
        %921 = vmatprep.subr.mxu0 0.0
        %922 = vmatpush1.msra.mxu0 0.0
        %923 = vmatprep.subr.mxu0 0.0
        %924 = vmatpush1.msra.mxu0 0.0
        %925 = vmatprep.subr.mxu0 0.0
        %926 = vmatpush1.msra.mxu0 0.0
        %927 = vmatprep.subr.mxu0 0.0
        %928 = vmatpush1.msra.mxu0 0.0
        %929 = vmatprep.subr.mxu0 0.0
        %930 = vmatpush1.msra.mxu0 0.0
        %931 = vmatprep.subr.mxu0 0.0
        %932 = vmatpush1.msra.mxu0 0.0
        %933 = vmatprep.subr.mxu0 0.0
        %934 = vmatpush1.msra.mxu0 0.0
        %935 = vmatprep.subr.mxu0 0.0
        %936 = vmatpush1.msra.mxu0 0.0
        %937 = vmatprep.subr.mxu0 0.0
        %938 = vmatpush1.msra.mxu0 0.0
        %939 = vmatprep.subr.mxu0 0.0
        %940 = vmatpush1.msra.mxu0 0.0
        %941 = vmatprep.subr.mxu0 0.0
        %942 = vmatpush1.msra.mxu0 0.0
        %943 = vmatprep.subr.mxu0 0.0
        %944 = vmatpush1.msra.mxu0 0.0
        %945 = vmatprep.subr.mxu0 0.0
        %946 = vmatpush1.msra.mxu0 0.0
        %947 = vmatprep.subr.mxu0 0.0
        %948 = vmatpush1.msra.mxu0 0.0
        %949 = vmatprep.subr.mxu0 0.0
        %950 = vmatpush1.msra.mxu0 0.0
        %951 = vmatprep.subr.mxu0 0.0
        %952 = vmatpush1.msra.mxu0 0.0
        %953 = vmatprep.subr.mxu0 0.0
        %954 = vmatpush1.msra.mxu0 0.0
        %955 = vmatprep.subr.mxu0 0.0
        %956 = vmatpush1.msra.mxu0 0.0
        %957 = vmatprep.subr.mxu0 0.0
        %958 = vmatpush1.msra.mxu0 0.0
        %959 = vmatprep.mubr.f32.mxu0 0.0
        %960 = vmatmul.mubr.f32.gmra.mrb[0].mxu0 %v893
        %v961 = vpop.f32.mrb[0].mxu0
        %v962 = vadd.f32 0.0, %v961
        %v963 = vpop.f32.mrb[0].mxu0
        %964 = vdwg.mxu0
        %v965 = vsel %vm891, %v773, 0.0
        %v966 = vrot.slane %v965, 4
        %v967 = vadd.f32 %v965, %v966
        %v968 = vrot.slane %v967, 2
        %v969 = vadd.f32 %v967, %v968
        %v970 = vrot.slane %v969, 1
        %v971 = vadd.f32 %v969, %v970
        %v972 = vmul.f32 %v621, %v971
        %v973 = vsel %vm891, %v972, 0.0
        %974 = vadd.xlane.f32.xlu0 %v973
        %v975 = vpop.xlane.xlu0 %974
        %v976 = vrcp.pop %v975
        %v977 = vmul.f32 %v962, %v976
        %978 = vst.msk [vmem:[#allocation2] sm:$0xff] %vm809, %v977
        %980 = vrot.lane.b32.xlu0 %v773, 112
        %v981 = vpop.permute.xlu0 %980
        %983 = vxpose.xlu0.b32.start [1/16] %v981, 128
        %984 = vxpose.xlu0.b32.cont [2/16] 0.0, 128
        %985 = vxpose.xlu0.b32.cont [3/16] 0.0, 128
        %986 = vxpose.xlu0.b32.cont [4/16] 0.0, 128
        %987 = vxpose.xlu0.b32.cont [5/16] 0.0, 128
        %988 = vxpose.xlu0.b32.cont [6/16] 0.0, 128
        %989 = vxpose.xlu0.b32.cont [7/16] 0.0, 128
        %990 = vxpose.xlu0.b32.cont [8/16] 0.0, 128
        %991 = vxpose.xlu0.b32.cont [9/16] 0.0, 128
        %992 = vxpose.xlu0.b32.cont [10/16] 0.0, 128
        %993 = vxpose.xlu0.b32.cont [11/16] 0.0, 128
        %994 = vxpose.xlu0.b32.cont [12/16] 0.0, 128
        %995 = vxpose.xlu0.b32.cont [13/16] 0.0, 128
        %996 = vxpose.xlu0.b32.cont [14/16] 0.0, 128
        %997 = vxpose.xlu0.b32.cont [15/16] 0.0, 128
        %998 = vxpose.xlu0.b32.end [16/16] 0.0, 128
        %v999 = vpop.trf.xlu0
        %v1000 = vpop.trf.xlu0
        %v1001 = vpop.trf.xlu0
        %v1002 = vpop.trf.xlu0
        %v1003 = vpop.trf.xlu0
        %v1004 = vpop.trf.xlu0
        %v1005 = vpop.trf.xlu0
        %v1006 = vpop.trf.xlu0
        %v1007 = vpop.trf.xlu0
        %v1008 = vpop.trf.xlu0
        %v1009 = vpop.trf.xlu0
        %v1010 = vpop.trf.xlu0
        %v1011 = vpop.trf.xlu0
        %v1012 = vpop.trf.xlu0
        %v1013 = vpop.trf.xlu0
        %v1014 = vpop.trf.xlu0
        %1015 = vrot.lane.b32.xlu0 %v460, 56
        %v1016 = vpop.permute.xlu0 %1015
        %v1019 = vsel %vm809, %v999, 0
        %v1022 = vsel %vm809, %v1000, 0
        %1024 = vmatprep.subr.mxu0 0.0
        %1025 = vmatpush1.msra.mxu0 %v1016
        %1026 = vmatprep.subr.mxu0 0.0
        %1027 = vmatpush1.msra.mxu0 0.0
        %1028 = vmatprep.subr.mxu0 0.0
        %1029 = vmatpush1.msra.mxu0 0.0
        %1030 = vmatprep.subr.mxu0 0.0
        %1031 = vmatpush1.msra.mxu0 0.0
        %1032 = vmatprep.subr.mxu0 0.0
        %1033 = vmatpush1.msra.mxu0 0.0
        %1034 = vmatprep.subr.mxu0 0.0
        %1035 = vmatpush1.msra.mxu0 0.0
        %1036 = vmatprep.subr.mxu0 0.0
        %1037 = vmatpush1.msra.mxu0 0.0
        %1038 = vmatprep.subr.mxu0 0.0
        %1039 = vmatpush1.msra.mxu0 0.0
        %1040 = vmatprep.subr.mxu0 0.0
        %1041 = vmatpush1.msra.mxu0 0.0
        %1042 = vmatprep.subr.mxu0 0.0
        %1043 = vmatpush1.msra.mxu0 0.0
        %1044 = vmatprep.subr.mxu0 0.0
        %1045 = vmatpush1.msra.mxu0 0.0
        %1046 = vmatprep.subr.mxu0 0.0
        %1047 = vmatpush1.msra.mxu0 0.0
        %1048 = vmatprep.subr.mxu0 0.0
        %1049 = vmatpush1.msra.mxu0 0.0
        %1050 = vmatprep.subr.mxu0 0.0
        %1051 = vmatpush1.msra.mxu0 0.0
        %1052 = vmatprep.subr.mxu0 0.0
        %1053 = vmatpush1.msra.mxu0 0.0
        %1054 = vmatprep.subr.mxu0 0.0
        %1055 = vmatpush1.msra.mxu0 0.0
        %1056 = vmatprep.subr.mxu0 0.0
        %1057 = vmatpush1.msra.mxu0 0.0
        %1058 = vmatprep.subr.mxu0 0.0
        %1059 = vmatpush1.msra.mxu0 0.0
        %1060 = vmatprep.subr.mxu0 0.0
        %1061 = vmatpush1.msra.mxu0 0.0
        %1062 = vmatprep.subr.mxu0 0.0
        %1063 = vmatpush1.msra.mxu0 0.0
        %1064 = vmatprep.subr.mxu0 0.0
        %1065 = vmatpush1.msra.mxu0 0.0
        %1066 = vmatprep.subr.mxu0 0.0
        %1067 = vmatpush1.msra.mxu0 0.0
        %1068 = vmatprep.subr.mxu0 0.0
        %1069 = vmatpush1.msra.mxu0 0.0
        %1070 = vmatprep.subr.mxu0 0.0
        %1071 = vmatpush1.msra.mxu0 0.0
        %1072 = vmatprep.subr.mxu0 0.0
        %1073 = vmatpush1.msra.mxu0 0.0
        %1074 = vmatprep.subr.mxu0 0.0
        %1075 = vmatpush1.msra.mxu0 0.0
        %1076 = vmatprep.subr.mxu0 0.0
        %1077 = vmatpush1.msra.mxu0 0.0
        %1078 = vmatprep.subr.mxu0 0.0
        %1079 = vmatpush1.msra.mxu0 0.0
        %1080 = vmatprep.subr.mxu0 0.0
        %1081 = vmatpush1.msra.mxu0 0.0
        %1082 = vmatprep.subr.mxu0 0.0
        %1083 = vmatpush1.msra.mxu0 0.0
        %1084 = vmatprep.subr.mxu0 0.0
        %1085 = vmatpush1.msra.mxu0 0.0
        %1086 = vmatprep.subr.mxu0 0.0
        %1087 = vmatpush1.msra.mxu0 0.0
        %1088 = vmatprep.mubr.f32.mxu0 0.0
        %1089 = vmatmul.mubr.f32.gmra.mrb[0].mxu0 %v1019
        %v1090 = vpop.f32.mrb[0].mxu0
        %v1091 = vadd.f32 0.0, %v1090
        %v1092 = vpop.f32.mrb[0].mxu0
        %1093 = vmatprep.mubr.f32.mxu0 0.0
        %1094 = vmatmul.mubr.f32.gmra.mrb[0].mxu0 %v1022
        %v1095 = vpop.f32.mrb[0].mxu0
        %v1096 = vadd.f32 0.0, %v1095
        %v1097 = vpop.f32.mrb[0].mxu0
        %1098 = vdwg.mxu0
        %1099 = vrot.lane.b32.xlu0 %v621, 112
        %v1100 = vpop.permute.xlu0 %1099
        %v1101 = vsel %vm891, %v1100, 0
        %1103 = vmatprep.subr.mxu0 0.0
        %1104 = vmatpush1.msra.mxu0 %v1091
        %1105 = vmatprep.subr.mxu0 0.0
        %1106 = vmatpush1.msra.mxu0 %v1096
        %1107 = vmatprep.subr.mxu0 0.0
        %1108 = vmatpush1.msra.mxu0 0.0
        %1109 = vmatprep.subr.mxu0 0.0
        %1110 = vmatpush1.msra.mxu0 0.0
        %1111 = vmatprep.subr.mxu0 0.0
        %1112 = vmatpush1.msra.mxu0 0.0
        %1113 = vmatprep.subr.mxu0 0.0
        %1114 = vmatpush1.msra.mxu0 0.0
        %1115 = vmatprep.subr.mxu0 0.0
        %1116 = vmatpush1.msra.mxu0 0.0
        %1117 = vmatprep.subr.mxu0 0.0
        %1118 = vmatpush1.msra.mxu0 0.0
        %1119 = vmatprep.subr.mxu0 0.0
        %1120 = vmatpush1.msra.mxu0 0.0
        %1121 = vmatprep.subr.mxu0 0.0
        %1122 = vmatpush1.msra.mxu0 0.0
        %1123 = vmatprep.subr.mxu0 0.0
        %1124 = vmatpush1.msra.mxu0 0.0
        %1125 = vmatprep.subr.mxu0 0.0
        %1126 = vmatpush1.msra.mxu0 0.0
        %1127 = vmatprep.subr.mxu0 0.0
        %1128 = vmatpush1.msra.mxu0 0.0
        %1129 = vmatprep.subr.mxu0 0.0
        %1130 = vmatpush1.msra.mxu0 0.0
        %1131 = vmatprep.subr.mxu0 0.0
        %1132 = vmatpush1.msra.mxu0 0.0
        %1133 = vmatprep.subr.mxu0 0.0
        %1134 = vmatpush1.msra.mxu0 0.0
        %1135 = vmatprep.subr.mxu0 0.0
        %1136 = vmatpush1.msra.mxu0 0.0
        %1137 = vmatprep.subr.mxu0 0.0
        %1138 = vmatpush1.msra.mxu0 0.0
        %1139 = vmatprep.subr.mxu0 0.0
        %1140 = vmatpush1.msra.mxu0 0.0
        %1141 = vmatprep.subr.mxu0 0.0
        %1142 = vmatpush1.msra.mxu0 0.0
        %1143 = vmatprep.subr.mxu0 0.0
        %1144 = vmatpush1.msra.mxu0 0.0
        %1145 = vmatprep.subr.mxu0 0.0
        %1146 = vmatpush1.msra.mxu0 0.0
        %1147 = vmatprep.subr.mxu0 0.0
        %1148 = vmatpush1.msra.mxu0 0.0
        %1149 = vmatprep.subr.mxu0 0.0
        %1150 = vmatpush1.msra.mxu0 0.0
        %1151 = vmatprep.subr.mxu0 0.0
        %1152 = vmatpush1.msra.mxu0 0.0
        %1153 = vmatprep.subr.mxu0 0.0
        %1154 = vmatpush1.msra.mxu0 0.0
        %1155 = vmatprep.subr.mxu0 0.0
        %1156 = vmatpush1.msra.mxu0 0.0
        %1157 = vmatprep.subr.mxu0 0.0
        %1158 = vmatpush1.msra.mxu0 0.0
        %1159 = vmatprep.subr.mxu0 0.0
        %1160 = vmatpush1.msra.mxu0 0.0
        %1161 = vmatprep.subr.mxu0 0.0
        %1162 = vmatpush1.msra.mxu0 0.0
        %1163 = vmatprep.subr.mxu0 0.0
        %1164 = vmatpush1.msra.mxu0 0.0
        %1165 = vmatprep.subr.mxu0 0.0
        %1166 = vmatpush1.msra.mxu0 0.0
        %1167 = vmatprep.mubr.f32.mxu0 0.0
        %1168 = vmatmul.mubr.f32.gmra.mrb[0].mxu0 %v1101
        %v1169 = vpop.f32.mrb[0].mxu0
        %v1170 = vadd.f32 0.0, %v1169
        %v1171 = vpop.f32.mrb[0].mxu0
        %1172 = vdwg.mxu0
        %vm1173 = vcmask 261248
        %v1174 = vsel %vm1173, %v773, 0.0
        %v1175 = vrot.slane %v1174, 4
        %v1176 = vadd.f32 %v1174, %v1175
        %v1177 = vrot.slane %v1176, 2
        %v1178 = vadd.f32 %v1176, %v1177
        %v1179 = vrot.slane %v1178, 1
        %v1180 = vadd.f32 %v1178, %v1179
        %v1181 = vmul.f32 %v621, %v1180
        %1183 = vrot.lane.b32.xlu0 %v1181, 112
        %v1184 = vpop.permute.xlu0 %1183
        %v1186 = vsel %vm891, %v1184, 0.0
        %1187 = vadd.xlane.f32.xlu0 %v1186
        %v1188 = vpop.xlane.xlu0 %1187
        %v1189 = vrcp.pop %v1188
        %v1190 = vmul.f32 %v1170, %v1189
        %1192 = vrot.lane.b32.xlu0 %v1190, 8
        %v1193 = vpop.permute.xlu0 %1192
        %vm1195 = vcmask 130112
        %1196 = vst.msk [vmem:[#allocation2] sm:$0xff] %vm1195, %v1193
        %1197 = vrot.lane.b32.xlu0 %v773, 96
        %v1198 = vpop.permute.xlu0 %1197
        %1200 = vxpose.xlu0.b32.start [1/16] %v1198, 128
        %1201 = vxpose.xlu0.b32.cont [2/16] 0.0, 128
        %1202 = vxpose.xlu0.b32.cont [3/16] 0.0, 128
        %1203 = vxpose.xlu0.b32.cont [4/16] 0.0, 128
        %1204 = vxpose.xlu0.b32.cont [5/16] 0.0, 128
        %1205 = vxpose.xlu0.b32.cont [6/16] 0.0, 128
        %1206 = vxpose.xlu0.b32.cont [7/16] 0.0, 128
        %1207 = vxpose.xlu0.b32.cont [8/16] 0.0, 128
        %1208 = vxpose.xlu0.b32.cont [9/16] 0.0, 128
        %1209 = vxpose.xlu0.b32.cont [10/16] 0.0, 128
        %1210 = vxpose.xlu0.b32.cont [11/16] 0.0, 128
        %1211 = vxpose.xlu0.b32.cont [12/16] 0.0, 128
        %1212 = vxpose.xlu0.b32.cont [13/16] 0.0, 128
        %1213 = vxpose.xlu0.b32.cont [14/16] 0.0, 128
        %1214 = vxpose.xlu0.b32.cont [15/16] 0.0, 128
        %1215 = vxpose.xlu0.b32.end [16/16] 0.0, 128
        %v1216 = vpop.trf.xlu0
        %v1217 = vpop.trf.xlu0
        %v1218 = vpop.trf.xlu0
        %v1219 = vpop.trf.xlu0
        %v1220 = vpop.trf.xlu0
        %v1221 = vpop.trf.xlu0
        %v1222 = vpop.trf.xlu0
        %v1223 = vpop.trf.xlu0
        %v1224 = vpop.trf.xlu0
        %v1225 = vpop.trf.xlu0
        %v1226 = vpop.trf.xlu0
        %v1227 = vpop.trf.xlu0
        %v1228 = vpop.trf.xlu0
        %v1229 = vpop.trf.xlu0
        %v1230 = vpop.trf.xlu0
        %v1231 = vpop.trf.xlu0
        %1232 = vrot.lane.b32.xlu0 %v460, 48
        %v1233 = vpop.permute.xlu0 %1232
        %v1236 = vsel %vm809, %v1216, 0
        %v1239 = vsel %vm809, %v1217, 0
        %1241 = vmatprep.subr.mxu0 0.0
        %1242 = vmatpush1.msra.mxu0 %v1233
        %1243 = vmatprep.subr.mxu0 0.0
        %1244 = vmatpush1.msra.mxu0 0.0
        %1245 = vmatprep.subr.mxu0 0.0
        %1246 = vmatpush1.msra.mxu0 0.0
        %1247 = vmatprep.subr.mxu0 0.0
        %1248 = vmatpush1.msra.mxu0 0.0
        %1249 = vmatprep.subr.mxu0 0.0
        %1250 = vmatpush1.msra.mxu0 0.0
        %1251 = vmatprep.subr.mxu0 0.0
        %1252 = vmatpush1.msra.mxu0 0.0
        %1253 = vmatprep.subr.mxu0 0.0
        %1254 = vmatpush1.msra.mxu0 0.0
        %1255 = vmatprep.subr.mxu0 0.0
        %1256 = vmatpush1.msra.mxu0 0.0
        %1257 = vmatprep.subr.mxu0 0.0
        %1258 = vmatpush1.msra.mxu0 0.0
        %1259 = vmatprep.subr.mxu0 0.0
        %1260 = vmatpush1.msra.mxu0 0.0
        %1261 = vmatprep.subr.mxu0 0.0
        %1262 = vmatpush1.msra.mxu0 0.0
        %1263 = vmatprep.subr.mxu0 0.0
        %1264 = vmatpush1.msra.mxu0 0.0
        %1265 = vmatprep.subr.mxu0 0.0
        %1266 = vmatpush1.msra.mxu0 0.0
        %1267 = vmatprep.subr.mxu0 0.0
        %1268 = vmatpush1.msra.mxu0 0.0
        %1269 = vmatprep.subr.mxu0 0.0
        %1270 = vmatpush1.msra.mxu0 0.0
        %1271 = vmatprep.subr.mxu0 0.0
        %1272 = vmatpush1.msra.mxu0 0.0
        %1273 = vmatprep.subr.mxu0 0.0
        %1274 = vmatpush1.msra.mxu0 0.0
        %1275 = vmatprep.subr.mxu0 0.0
        %1276 = vmatpush1.msra.mxu0 0.0
        %1277 = vmatprep.subr.mxu0 0.0
        %1278 = vmatpush1.msra.mxu0 0.0
        %1279 = vmatprep.subr.mxu0 0.0
        %1280 = vmatpush1.msra.mxu0 0.0
        %1281 = vmatprep.subr.mxu0 0.0
        %1282 = vmatpush1.msra.mxu0 0.0
        %1283 = vmatprep.subr.mxu0 0.0
        %1284 = vmatpush1.msra.mxu0 0.0
        %1285 = vmatprep.subr.mxu0 0.0
        %1286 = vmatpush1.msra.mxu0 0.0
        %1287 = vmatprep.subr.mxu0 0.0
        %1288 = vmatpush1.msra.mxu0 0.0
        %1289 = vmatprep.subr.mxu0 0.0
        %1290 = vmatpush1.msra.mxu0 0.0
        %1291 = vmatprep.subr.mxu0 0.0
        %1292 = vmatpush1.msra.mxu0 0.0
        %1293 = vmatprep.subr.mxu0 0.0
        %1294 = vmatpush1.msra.mxu0 0.0
        %1295 = vmatprep.subr.mxu0 0.0
        %1296 = vmatpush1.msra.mxu0 0.0
        %1297 = vmatprep.subr.mxu0 0.0
        %1298 = vmatpush1.msra.mxu0 0.0
        %1299 = vmatprep.subr.mxu0 0.0
        %1300 = vmatpush1.msra.mxu0 0.0
        %1301 = vmatprep.subr.mxu0 0.0
        %1302 = vmatpush1.msra.mxu0 0.0
        %1303 = vmatprep.subr.mxu0 0.0
        %1304 = vmatpush1.msra.mxu0 0.0
        %1305 = vmatprep.mubr.f32.mxu0 0.0
        %1306 = vmatmul.mubr.f32.gmra.mrb[0].mxu0 %v1236
        %v1307 = vpop.f32.mrb[0].mxu0
        %v1308 = vadd.f32 0.0, %v1307
        %v1309 = vpop.f32.mrb[0].mxu0
        %1310 = vmatprep.mubr.f32.mxu0 0.0
        %1311 = vmatmul.mubr.f32.gmra.mrb[0].mxu0 %v1239
        %v1312 = vpop.f32.mrb[0].mxu0
        %v1313 = vadd.f32 0.0, %v1312
        %v1314 = vpop.f32.mrb[0].mxu0
        %1315 = vdwg.mxu0
        %1316 = vrot.lane.b32.xlu0 %v621, 96
        %v1317 = vpop.permute.xlu0 %1316
        %v1318 = vsel %vm891, %v1317, 0
        %1320 = vmatprep.subr.mxu0 0.0
        %1321 = vmatpush1.msra.mxu0 %v1308
        %1322 = vmatprep.subr.mxu0 0.0
        %1323 = vmatpush1.msra.mxu0 %v1313
        %1324 = vmatprep.subr.mxu0 0.0
        %1325 = vmatpush1.msra.mxu0 0.0
        %1326 = vmatprep.subr.mxu0 0.0
        %1327 = vmatpush1.msra.mxu0 0.0
        %1328 = vmatprep.subr.mxu0 0.0
        %1329 = vmatpush1.msra.mxu0 0.0
        %1330 = vmatprep.subr.mxu0 0.0
        %1331 = vmatpush1.msra.mxu0 0.0
        %1332 = vmatprep.subr.mxu0 0.0
        %1333 = vmatpush1.msra.mxu0 0.0
        %1334 = vmatprep.subr.mxu0 0.0
        %1335 = vmatpush1.msra.mxu0 0.0
        %1336 = vmatprep.subr.mxu0 0.0
        %1337 = vmatpush1.msra.mxu0 0.0
        %1338 = vmatprep.subr.mxu0 0.0
        %1339 = vmatpush1.msra.mxu0 0.0
        %1340 = vmatprep.subr.mxu0 0.0
        %1341 = vmatpush1.msra.mxu0 0.0
        %1342 = vmatprep.subr.mxu0 0.0
        %1343 = vmatpush1.msra.mxu0 0.0
        %1344 = vmatprep.subr.mxu0 0.0
        %1345 = vmatpush1.msra.mxu0 0.0
        %1346 = vmatprep.subr.mxu0 0.0
        %1347 = vmatpush1.msra.mxu0 0.0
        %1348 = vmatprep.subr.mxu0 0.0
        %1349 = vmatpush1.msra.mxu0 0.0
        %1350 = vmatprep.subr.mxu0 0.0
        %1351 = vmatpush1.msra.mxu0 0.0
        %1352 = vmatprep.subr.mxu0 0.0
        %1353 = vmatpush1.msra.mxu0 0.0
        %1354 = vmatprep.subr.mxu0 0.0
        %1355 = vmatpush1.msra.mxu0 0.0
        %1356 = vmatprep.subr.mxu0 0.0
        %1357 = vmatpush1.msra.mxu0 0.0
        %1358 = vmatprep.subr.mxu0 0.0
        %1359 = vmatpush1.msra.mxu0 0.0
        %1360 = vmatprep.subr.mxu0 0.0
        %1361 = vmatpush1.msra.mxu0 0.0
        %1362 = vmatprep.subr.mxu0 0.0
        %1363 = vmatpush1.msra.mxu0 0.0
        %1364 = vmatprep.subr.mxu0 0.0
        %1365 = vmatpush1.msra.mxu0 0.0
        %1366 = vmatprep.subr.mxu0 0.0
        %1367 = vmatpush1.msra.mxu0 0.0
        %1368 = vmatprep.subr.mxu0 0.0
        %1369 = vmatpush1.msra.mxu0 0.0
        %1370 = vmatprep.subr.mxu0 0.0
        %1371 = vmatpush1.msra.mxu0 0.0
        %1372 = vmatprep.subr.mxu0 0.0
        %1373 = vmatpush1.msra.mxu0 0.0
        %1374 = vmatprep.subr.mxu0 0.0
        %1375 = vmatpush1.msra.mxu0 0.0
        %1376 = vmatprep.subr.mxu0 0.0
        %1377 = vmatpush1.msra.mxu0 0.0
        %1378 = vmatprep.subr.mxu0 0.0
        %1379 = vmatpush1.msra.mxu0 0.0
        %1380 = vmatprep.subr.mxu0 0.0
        %1381 = vmatpush1.msra.mxu0 0.0
        %1382 = vmatprep.subr.mxu0 0.0
        %1383 = vmatpush1.msra.mxu0 0.0
        %1384 = vmatprep.mubr.f32.mxu0 0.0
        %1385 = vmatmul.mubr.f32.gmra.mrb[0].mxu0 %v1318
        %v1386 = vpop.f32.mrb[0].mxu0
        %v1387 = vadd.f32 0.0, %v1386
        %v1388 = vpop.f32.mrb[0].mxu0
        %1389 = vdwg.mxu0
        %vm1390 = vcmask 392448
        %v1391 = vsel %vm1390, %v773, 0.0
        %v1392 = vrot.slane %v1391, 4
        %v1393 = vadd.f32 %v1391, %v1392
        %v1394 = vrot.slane %v1393, 2
        %v1395 = vadd.f32 %v1393, %v1394
        %v1396 = vrot.slane %v1395, 1
        %v1397 = vadd.f32 %v1395, %v1396
        %v1398 = vmul.f32 %v621, %v1397
        %1400 = vrot.lane.b32.xlu0 %v1398, 96
        %v1401 = vpop.permute.xlu0 %1400
        %v1403 = vsel %vm891, %v1401, 0.0
        %1404 = vadd.xlane.f32.xlu0 %v1403
        %v1405 = vpop.xlane.xlu0 %1404
        %v1406 = vrcp.pop %v1405
        %v1407 = vmul.f32 %v1387, %v1406
        %1409 = vrot.lane.b32.xlu0 %v1407, 16
        %v1410 = vpop.permute.xlu0 %1409
        %vm1412 = vcmask 195712
        %1413 = vst.msk [vmem:[#allocation2] sm:$0xff] %vm1412, %v1410
        %1414 = vrot.lane.b32.xlu0 %v773, 80
        %v1415 = vpop.permute.xlu0 %1414
        %1417 = vxpose.xlu0.b32.start [1/16] %v1415, 128
        %1418 = vxpose.xlu0.b32.cont [2/16] 0.0, 128
        %1419 = vxpose.xlu0.b32.cont [3/16] 0.0, 128
        %1420 = vxpose.xlu0.b32.cont [4/16] 0.0, 128
        %1421 = vxpose.xlu0.b32.cont [5/16] 0.0, 128
        %1422 = vxpose.xlu0.b32.cont [6/16] 0.0, 128
        %1423 = vxpose.xlu0.b32.cont [7/16] 0.0, 128
        %1424 = vxpose.xlu0.b32.cont [8/16] 0.0, 128
        %1425 = vxpose.xlu0.b32.cont [9/16] 0.0, 128
        %1426 = vxpose.xlu0.b32.cont [10/16] 0.0, 128
        %1427 = vxpose.xlu0.b32.cont [11/16] 0.0, 128
        %1428 = vxpose.xlu0.b32.cont [12/16] 0.0, 128
        %1429 = vxpose.xlu0.b32.cont [13/16] 0.0, 128
        %1430 = vxpose.xlu0.b32.cont [14/16] 0.0, 128
        %1431 = vxpose.xlu0.b32.cont [15/16] 0.0, 128
        %1432 = vxpose.xlu0.b32.end [16/16] 0.0, 128
        %v1433 = vpop.trf.xlu0
        %v1434 = vpop.trf.xlu0
        %v1435 = vpop.trf.xlu0
        %v1436 = vpop.trf.xlu0
        %v1437 = vpop.trf.xlu0
        %v1438 = vpop.trf.xlu0
        %v1439 = vpop.trf.xlu0
        %v1440 = vpop.trf.xlu0
        %v1441 = vpop.trf.xlu0
        %v1442 = vpop.trf.xlu0
        %v1443 = vpop.trf.xlu0
        %v1444 = vpop.trf.xlu0
        %v1445 = vpop.trf.xlu0
        %v1446 = vpop.trf.xlu0
        %v1447 = vpop.trf.xlu0
        %v1448 = vpop.trf.xlu0
        %1449 = vrot.lane.b32.xlu0 %v460, 40
        %v1450 = vpop.permute.xlu0 %1449
        %v1453 = vsel %vm809, %v1433, 0
        %v1456 = vsel %vm809, %v1434, 0
        %1458 = vmatprep.subr.mxu0 0.0
        %1459 = vmatpush1.msra.mxu0 %v1450
        %1460 = vmatprep.subr.mxu0 0.0
        %1461 = vmatpush1.msra.mxu0 0.0
        %1462 = vmatprep.subr.mxu0 0.0
        %1463 = vmatpush1.msra.mxu0 0.0
        %1464 = vmatprep.subr.mxu0 0.0
        %1465 = vmatpush1.msra.mxu0 0.0
        %1466 = vmatprep.subr.mxu0 0.0
        %1467 = vmatpush1.msra.mxu0 0.0
        %1468 = vmatprep.subr.mxu0 0.0
        %1469 = vmatpush1.msra.mxu0 0.0
        %1470 = vmatprep.subr.mxu0 0.0
        %1471 = vmatpush1.msra.mxu0 0.0
        %1472 = vmatprep.subr.mxu0 0.0
        %1473 = vmatpush1.msra.mxu0 0.0
        %1474 = vmatprep.subr.mxu0 0.0
        %1475 = vmatpush1.msra.mxu0 0.0
        %1476 = vmatprep.subr.mxu0 0.0
        %1477 = vmatpush1.msra.mxu0 0.0
        %1478 = vmatprep.subr.mxu0 0.0
        %1479 = vmatpush1.msra.mxu0 0.0
        %1480 = vmatprep.subr.mxu0 0.0
        %1481 = vmatpush1.msra.mxu0 0.0
        %1482 = vmatprep.subr.mxu0 0.0
        %1483 = vmatpush1.msra.mxu0 0.0
        %1484 = vmatprep.subr.mxu0 0.0
        %1485 = vmatpush1.msra.mxu0 0.0
        %1486 = vmatprep.subr.mxu0 0.0
        %1487 = vmatpush1.msra.mxu0 0.0
        %1488 = vmatprep.subr.mxu0 0.0
        %1489 = vmatpush1.msra.mxu0 0.0
        %1490 = vmatprep.subr.mxu0 0.0
        %1491 = vmatpush1.msra.mxu0 0.0
        %1492 = vmatprep.subr.mxu0 0.0
        %1493 = vmatpush1.msra.mxu0 0.0
        %1494 = vmatprep.subr.mxu0 0.0
        %1495 = vmatpush1.msra.mxu0 0.0
        %1496 = vmatprep.subr.mxu0 0.0
        %1497 = vmatpush1.msra.mxu0 0.0
        %1498 = vmatprep.subr.mxu0 0.0
        %1499 = vmatpush1.msra.mxu0 0.0
        %1500 = vmatprep.subr.mxu0 0.0
        %1501 = vmatpush1.msra.mxu0 0.0
        %1502 = vmatprep.subr.mxu0 0.0
        %1503 = vmatpush1.msra.mxu0 0.0
        %1504 = vmatprep.subr.mxu0 0.0
        %1505 = vmatpush1.msra.mxu0 0.0
        %1506 = vmatprep.subr.mxu0 0.0
        %1507 = vmatpush1.msra.mxu0 0.0
        %1508 = vmatprep.subr.mxu0 0.0
        %1509 = vmatpush1.msra.mxu0 0.0
        %1510 = vmatprep.subr.mxu0 0.0
        %1511 = vmatpush1.msra.mxu0 0.0
        %1512 = vmatprep.subr.mxu0 0.0
        %1513 = vmatpush1.msra.mxu0 0.0
        %1514 = vmatprep.subr.mxu0 0.0
        %1515 = vmatpush1.msra.mxu0 0.0
        %1516 = vmatprep.subr.mxu0 0.0
        %1517 = vmatpush1.msra.mxu0 0.0
        %1518 = vmatprep.subr.mxu0 0.0
        %1519 = vmatpush1.msra.mxu0 0.0
        %1520 = vmatprep.subr.mxu0 0.0
        %1521 = vmatpush1.msra.mxu0 0.0
        %1522 = vmatprep.mubr.f32.mxu0 0.0
        %1523 = vmatmul.mubr.f32.gmra.mrb[0].mxu0 %v1453
        %v1524 = vpop.f32.mrb[0].mxu0
        %v1525 = vadd.f32 0.0, %v1524
        %v1526 = vpop.f32.mrb[0].mxu0
        %1527 = vmatprep.mubr.f32.mxu0 0.0
        %1528 = vmatmul.mubr.f32.gmra.mrb[0].mxu0 %v1456
        %v1529 = vpop.f32.mrb[0].mxu0
        %v1530 = vadd.f32 0.0, %v1529
        %v1531 = vpop.f32.mrb[0].mxu0
        %1532 = vdwg.mxu0
        %1533 = vrot.lane.b32.xlu0 %v621, 80
        %v1534 = vpop.permute.xlu0 %1533
        %v1535 = vsel %vm891, %v1534, 0
        %1537 = vmatprep.subr.mxu0 0.0
        %1538 = vmatpush1.msra.mxu0 %v1525
        %1539 = vmatprep.subr.mxu0 0.0
        %1540 = vmatpush1.msra.mxu0 %v1530
        %1541 = vmatprep.subr.mxu0 0.0
        %1542 = vmatpush1.msra.mxu0 0.0
        %1543 = vmatprep.subr.mxu0 0.0
        %1544 = vmatpush1.msra.mxu0 0.0
        %1545 = vmatprep.subr.mxu0 0.0
        %1546 = vmatpush1.msra.mxu0 0.0
        %1547 = vmatprep.subr.mxu0 0.0
        %1548 = vmatpush1.msra.mxu0 0.0
        %1549 = vmatprep.subr.mxu0 0.0
        %1550 = vmatpush1.msra.mxu0 0.0
        %1551 = vmatprep.subr.mxu0 0.0
        %1552 = vmatpush1.msra.mxu0 0.0
        %1553 = vmatprep.subr.mxu0 0.0
        %1554 = vmatpush1.msra.mxu0 0.0
        %1555 = vmatprep.subr.mxu0 0.0
        %1556 = vmatpush1.msra.mxu0 0.0
        %1557 = vmatprep.subr.mxu0 0.0
        %1558 = vmatpush1.msra.mxu0 0.0
        %1559 = vmatprep.subr.mxu0 0.0
        %1560 = vmatpush1.msra.mxu0 0.0
        %1561 = vmatprep.subr.mxu0 0.0
        %1562 = vmatpush1.msra.mxu0 0.0
        %1563 = vmatprep.subr.mxu0 0.0
        %1564 = vmatpush1.msra.mxu0 0.0
        %1565 = vmatprep.subr.mxu0 0.0
        %1566 = vmatpush1.msra.mxu0 0.0
        %1567 = vmatprep.subr.mxu0 0.0
        %1568 = vmatpush1.msra.mxu0 0.0
        %1569 = vmatprep.subr.mxu0 0.0
        %1570 = vmatpush1.msra.mxu0 0.0
        %1571 = vmatprep.subr.mxu0 0.0
        %1572 = vmatpush1.msra.mxu0 0.0
        %1573 = vmatprep.subr.mxu0 0.0
        %1574 = vmatpush1.msra.mxu0 0.0
        %1575 = vmatprep.subr.mxu0 0.0
        %1576 = vmatpush1.msra.mxu0 0.0
        %1577 = vmatprep.subr.mxu0 0.0
        %1578 = vmatpush1.msra.mxu0 0.0
        %1579 = vmatprep.subr.mxu0 0.0
        %1580 = vmatpush1.msra.mxu0 0.0
        %1581 = vmatprep.subr.mxu0 0.0
        %1582 = vmatpush1.msra.mxu0 0.0
        %1583 = vmatprep.subr.mxu0 0.0
        %1584 = vmatpush1.msra.mxu0 0.0
        %1585 = vmatprep.subr.mxu0 0.0
        %1586 = vmatpush1.msra.mxu0 0.0
        %1587 = vmatprep.subr.mxu0 0.0
        %1588 = vmatpush1.msra.mxu0 0.0
        %1589 = vmatprep.subr.mxu0 0.0
        %1590 = vmatpush1.msra.mxu0 0.0
        %1591 = vmatprep.subr.mxu0 0.0
        %1592 = vmatpush1.msra.mxu0 0.0
        %1593 = vmatprep.subr.mxu0 0.0
        %1594 = vmatpush1.msra.mxu0 0.0
        %1595 = vmatprep.subr.mxu0 0.0
        %1596 = vmatpush1.msra.mxu0 0.0
        %1597 = vmatprep.subr.mxu0 0.0
        %1598 = vmatpush1.msra.mxu0 0.0
        %1599 = vmatprep.subr.mxu0 0.0
        %1600 = vmatpush1.msra.mxu0 0.0
        %1601 = vmatprep.mubr.f32.mxu0 0.0
        %1602 = vmatmul.mubr.f32.gmra.mrb[0].mxu0 %v1535
        %v1603 = vpop.f32.mrb[0].mxu0
        %v1604 = vadd.f32 0.0, %v1603
        %v1605 = vpop.f32.mrb[0].mxu0
        %1606 = vdwg.mxu0
        %vm1607 = vcmask 523648
        %v1608 = vsel %vm1607, %v773, 0.0
        %v1609 = vrot.slane %v1608, 4
        %v1610 = vadd.f32 %v1608, %v1609
        %v1611 = vrot.slane %v1610, 2
        %v1612 = vadd.f32 %v1610, %v1611
        %v1613 = vrot.slane %v1612, 1
        %v1614 = vadd.f32 %v1612, %v1613
        %v1615 = vmul.f32 %v621, %v1614
        %1617 = vrot.lane.b32.xlu0 %v1615, 80
        %v1618 = vpop.permute.xlu0 %1617
        %v1620 = vsel %vm891, %v1618, 0.0
        %1621 = vadd.xlane.f32.xlu0 %v1620
        %v1622 = vpop.xlane.xlu0 %1621
        %v1623 = vrcp.pop %v1622
        %v1624 = vmul.f32 %v1604, %v1623
        %1626 = vrot.lane.b32.xlu0 %v1624, 24
        %v1627 = vpop.permute.xlu0 %1626
        %vm1629 = vcmask 261312
        %1630 = vst.msk [vmem:[#allocation2] sm:$0xff] %vm1629, %v1627
        %v1631 = vld [vmem:[#allocation2] sm:$0xff]
        %v1632 = vld [vmem:[#allocation12] sm:$0xff]
        %v1633 = vld [vmem:[#allocation12 + $0x8] sm:$0xff]
        %v1634 = vld [vmem:[#allocation12 + $0x10] sm:$0xff]
        %v1635 = vld [vmem:[#allocation12 + $0x18] sm:$0xff]
        %v1636 = vld [vmem:[#allocation14] sm:$0x1]
        %v1638 = vlaneseq
        %v1639 = vshrl.u32 %v1638, 7
        %v1640 = vsub.s32 0, %v1639
        %v1641 = vrot.slane %v1636, %v1640
        %v1644 = vsel %vm389, %v1631, 0
        %1646 = vmatprep.subr.mxu0 0.0
        %1647 = vmatpush1.msra.mxu0 %v1632
        %1648 = vmatprep.subr.mxu0 0.0
        %1649 = vmatpush1.msra.mxu0 %v1633
        %1650 = vmatprep.subr.mxu0 0.0
        %1651 = vmatpush1.msra.mxu0 %v1634
        %1652 = vmatprep.subr.mxu0 0.0
        %1653 = vmatpush1.msra.mxu0 %v1635
        %1654 = vmatprep.subr.mxu0 0.0
        %1655 = vmatpush1.msra.mxu0 0.0
        %1656 = vmatprep.subr.mxu0 0.0
        %1657 = vmatpush1.msra.mxu0 0.0
        %1658 = vmatprep.subr.mxu0 0.0
        %1659 = vmatpush1.msra.mxu0 0.0
        %1660 = vmatprep.subr.mxu0 0.0
        %1661 = vmatpush1.msra.mxu0 0.0
        %1662 = vmatprep.subr.mxu0 0.0
        %1663 = vmatpush1.msra.mxu0 0.0
        %1664 = vmatprep.subr.mxu0 0.0
        %1665 = vmatpush1.msra.mxu0 0.0
        %1666 = vmatprep.subr.mxu0 0.0
        %1667 = vmatpush1.msra.mxu0 0.0
        %1668 = vmatprep.subr.mxu0 0.0
        %1669 = vmatpush1.msra.mxu0 0.0
        %1670 = vmatprep.subr.mxu0 0.0
        %1671 = vmatpush1.msra.mxu0 0.0
        %1672 = vmatprep.subr.mxu0 0.0
        %1673 = vmatpush1.msra.mxu0 0.0
        %1674 = vmatprep.subr.mxu0 0.0
        %1675 = vmatpush1.msra.mxu0 0.0
        %1676 = vmatprep.subr.mxu0 0.0
        %1677 = vmatpush1.msra.mxu0 0.0
        %1678 = vmatprep.subr.mxu0 0.0
        %1679 = vmatpush1.msra.mxu0 0.0
        %1680 = vmatprep.subr.mxu0 0.0
        %1681 = vmatpush1.msra.mxu0 0.0
        %1682 = vmatprep.subr.mxu0 0.0
        %1683 = vmatpush1.msra.mxu0 0.0
        %1684 = vmatprep.subr.mxu0 0.0
        %1685 = vmatpush1.msra.mxu0 0.0
        %1686 = vmatprep.subr.mxu0 0.0
        %1687 = vmatpush1.msra.mxu0 0.0
        %1688 = vmatprep.subr.mxu0 0.0
        %1689 = vmatpush1.msra.mxu0 0.0
        %1690 = vmatprep.subr.mxu0 0.0
        %1691 = vmatpush1.msra.mxu0 0.0
        %1692 = vmatprep.subr.mxu0 0.0
        %1693 = vmatpush1.msra.mxu0 0.0
        %1694 = vmatprep.subr.mxu0 0.0
        %1695 = vmatpush1.msra.mxu0 0.0
        %1696 = vmatprep.subr.mxu0 0.0
        %1697 = vmatpush1.msra.mxu0 0.0
        %1698 = vmatprep.subr.mxu0 0.0
        %1699 = vmatpush1.msra.mxu0 0.0
        %1700 = vmatprep.subr.mxu0 0.0
        %1701 = vmatpush1.msra.mxu0 0.0
        %1702 = vmatprep.subr.mxu0 0.0
        %1703 = vmatpush1.msra.mxu0 0.0
        %1704 = vmatprep.subr.mxu0 0.0
        %1705 = vmatpush1.msra.mxu0 0.0
        %1706 = vmatprep.subr.mxu0 0.0
        %1707 = vmatpush1.msra.mxu0 0.0
        %1708 = vmatprep.subr.mxu0 0.0
        %1709 = vmatpush1.msra.mxu0 0.0
        %1710 = vmatprep.mubr.f32.mxu0 0.0
        %1711 = vmatmul.mubr.f32.gmra.mrb[0].mxu0 %v1644
        %v1712 = vpop.f32.mrb[0].mxu0
        %v1713 = vadd.f32 %v1641, %v1712
        %v1714 = vpop.f32.mrb[0].mxu0
        %1715 = vdwg.mxu0
        %1716 = vst.msk [vmem:[%s376] sm:$0xff] %vm389, %v1713
        %s1717 = sand.u32 %s187, 1
        %s1718 = scalar_lea.sflag [#allocation5], %s1717
        %s1719 = sand.u32 %s187, 1
        %s1720 = smul.addr %s1719, 8
        %s1721 = scalar_lea.vmem [#allocation15], %s1720
        // Predicated region
        $region77: #{tpu_custom_call.1} parent=47 // pred_check
          %p1722 = pneg %p197
        $region78: #{tpu_custom_call.1} parent=47 // pred_check_branch
          %1724 = sbr.rel (%p1722) target = $region80
        $region79: #{tpu_custom_call.1} parent=47 // pred_region
          %s1726 = ssub.s32 128, 128
          %1727 = vsyncadd %s1718, %s1726
          %s1728 = smul.addr %s27, 128
          %s1729 = scalar_lea.hbm %s7, %s1728
          %s1731 = sshll.u32 %s1721, 4
          %s1732 = int_to_ptr.vmem [resolvable:$true] %s1731
          %1734 = dma.vmem_to_hbm [thread:$0]  %s1732, 128, %s1729, %s1718
        $region80: #{tpu_custom_call.1} parent=47 // pred_fallthru
          _
      $region48: #{tpu_custom_call.1} parent=5 // pred_fallthru
        _
      %p1735 = scmp.le.s32.totalorder 2, %s22
      // Predicated region
      $region81: #{tpu_custom_call.1} parent=5 // pred_check
        %p1736 = pneg %p1735
      $region82: #{tpu_custom_call.1} parent=5 // pred_check_branch
        %1738 = sbr.rel (%p1736) target = $region84
      $region83: #{tpu_custom_call.1} parent=5 // pred_region
        %s1739 = ssub.s32 %s22, 2
        // Predicated region
        $region85: #{tpu_custom_call.1} parent=83 // pred_check
          %p1740 = pneg %p203
        $region86: #{tpu_custom_call.1} parent=83 // pred_check_branch
          %1742 = sbr.rel (%p1740) target = $region88
        $region87: #{tpu_custom_call.1} parent=83 // pred_region
          %s1743 = sand.u32 %s188, 1
          %s1744 = scalar_lea.sflag [#allocation5], %s1743
          %s1745 = sand.u32 %s188, 1
          %s1746 = smul.addr %s1745, 8
          %s1747 = scalar_lea.vmem [#allocation15], %s1746
          %1748 = dma.done %s1744, 128
        $region88: #{tpu_custom_call.1} parent=83 // pred_fallthru
          _
      $region84: #{tpu_custom_call.1} parent=5 // pred_fallthru
        _
    $region6: #{tpu_custom_call.1} parent=1 // loop_footer
      %s26 = sadd.s32 1, %s22
    $region7: #{tpu_custom_call.1} parent=1 // loop_footer_branch
      %21 = sbr.rel target = $region3
    $region8: #{tpu_custom_call.1} parent=1 // loop_exit
      _
    %1749 = vsyncpa [#allocation4], 1
    %s1750 = scalar_lea.sflag [#allocation4], 1
    %1751 = vsyncpa %s1750, 1
    %1752 = vsyncpa [#allocation7], 1
    %1753 = vsyncpa [#allocation10], 1
    %1754 = vsyncpa [#allocation13], 1
    %1755 = vsyncpa [#allocation5], 1
    %s1756 = scalar_lea.sflag [#allocation5], 1
    %1757 = vsyncpa %s1756, 1

</llo_original>
